<compile_context>
chip_gen: v7x
topology: tpu7x:2x2x1
jax: 0.10.0
libtpu: 0.0.40
codegen_flags: <defaults>
</compile_context>

<pallas_src>
import jax
import jax.numpy as jnp
from jax.experimental import pallas as pl
from jax.experimental.pallas import tpu as pltpu


def vae_forward_kernel(
    x_ref,        # (TB, D_in)        f32 flattened input tile
    eps_ref,      # (TB, D_lat)       f32 reparameterization noise tile
    w_enc_ref,    # (D_in, D_hid)     bf16
    b_enc_ref,    # (1, D_hid)        f32
    w_mulv_ref,   # (D_hid, 2*D_lat)  bf16  [w_mu | w_logvar]
    b_mulv_ref,   # (1, 2*D_lat)      f32
    w_dec1_ref,   # (D_lat, D_hid)    bf16
    b_dec1_ref,   # (1, D_hid)        f32
    w_dec2_ref,   # (D_hid, D_in)     bf16
    b_dec2_ref,   # (1, D_in)         f32
    recon_ref,    # (TB, D_in)        f32 out
    mulv_ref,     # (TB, 2*D_lat)     f32 out  [mu | logvar]
):
    d_lat = mulv_ref.shape[-1] // 2
    x = x_ref[...]

    # ---- encoder: bf16 MXU operands, f32 accumulate ----
    h = jnp.dot(x.astype(jnp.bfloat16), w_enc_ref[...],
                preferred_element_type=jnp.float32)
    h = jnp.maximum(h + b_enc_ref[...], 0.0)                      # ReLU (f32)

    # fused mu | logvar projection; split at an aligned 128-lane boundary
    mulv = jnp.dot(h.astype(jnp.bfloat16), w_mulv_ref[...],
                   preferred_element_type=jnp.float32) + b_mulv_ref[...]
    mu = mulv[:, :d_lat]
    logvar = mulv[:, d_lat:]

    # ---- reparameterize: z = mu + exp(0.5 * logvar) * eps (f32, EUP exp) ----
    std = jnp.exp(0.5 * logvar)
    z = mu + std * eps_ref[...]

    # ---- decoder ----
    hd = jnp.dot(z.astype(jnp.bfloat16), w_dec1_ref[...],
                 preferred_element_type=jnp.float32)
    hd = jnp.maximum(hd + b_dec1_ref[...], 0.0)                   # ReLU (f32)

    logits = jnp.dot(hd.astype(jnp.bfloat16), w_dec2_ref[...],
                     preferred_element_type=jnp.float32) + b_dec2_ref[...]
    recon = jax.nn.sigmoid(logits)

    recon_ref[...] = recon.astype(recon_ref.dtype)
    mulv_ref[...] = mulv.astype(mulv_ref.dtype)


def vae_forward(x_nchw, params, eps):
    """Fused VAE forward.  x_nchw: (B, C, H, W) float32, eps: (B, D_lat)."""
    B, C, H, W = x_nchw.shape
    D_in = C * H * W
    x_flat = x_nchw.reshape(B, D_in)

    (w_enc, b_enc, w_mulv, b_mulv, w_dec1, b_dec1, w_dec2, b_dec2) = params
    D_hid = w_enc.shape[1]
    D_lat = w_mulv.shape[1] // 2
    assert eps.shape == (B, D_lat)

    # Pad the batch to a multiple of 16 (bf16 sublane packing), pick a batch
    # tile TB <= 128 (multiple of 16), and pad Bp to a multiple of TB so the
    # grid divides evenly.
    Bp = max(16, ((B + 15) // 16) * 16)
    TB = min(Bp, 128)
    Bp = ((Bp + TB - 1) // TB) * TB
    pad = Bp - B
    x_pad = jnp.pad(x_flat, ((0, pad), (0, 0)))
    eps_pad = jnp.pad(eps, ((0, pad), (0, 0)))

    grid = (Bp // TB,)

    # Weights/biases: constant block index across the grid -> DMA'd once,
    # VMEM-resident.  Activations/outputs: tiled on the batch axis and
    # auto-pipelined (double-buffered) by BlockSpec.
    const2d = lambda a: pl.BlockSpec(a.shape, lambda i: (0, 0))

    in_specs = [
        pl.BlockSpec((TB, D_in), lambda i: (i, 0)),     # x
        pl.BlockSpec((TB, D_lat), lambda i: (i, 0)),    # eps
        const2d(w_enc), const2d(b_enc),
        const2d(w_mulv), const2d(b_mulv),
        const2d(w_dec1), const2d(b_dec1),
        const2d(w_dec2), const2d(b_dec2),
    ]
    out_specs = [
        pl.BlockSpec((TB, D_in), lambda i: (i, 0)),       # recon
        pl.BlockSpec((TB, 2 * D_lat), lambda i: (i, 0)),  # [mu | logvar]
    ]
    out_shapes = (
        jax.ShapeDtypeStruct((Bp, D_in), jnp.float32),
        jax.ShapeDtypeStruct((Bp, 2 * D_lat), jnp.float32),
    )

    recon_pad, mulv_pad = pl.pallas_call(
        vae_forward_kernel,
        out_shape=out_shapes,
        grid=grid,
        in_specs=in_specs,
        out_specs=out_specs,
        compiler_params=pltpu.CompilerParams(
            dimension_semantics=("parallel",),   # v7x: shard batch tiles over 2 TCs
            vmem_limit_bytes=16 << 20,
        ),
    )(x_pad, eps_pad, w_enc, b_enc, w_mulv, b_mulv,
      w_dec1, b_dec1, w_dec2, b_dec2)

    recon = recon_pad[:B].reshape(B, C, H, W)
    mu = mulv_pad[:B, :D_lat]
    logvar = mulv_pad[:B, D_lat:]
    # Standard VanillaVAE forward contract: [recon, input, mu, log_var]
    return recon, x_nchw, mu, logvar


def init_params(key, d_in, d_hid, d_lat):
    ks = jax.random.split(key, 5)
    scale = lambda fan_in: 1.0 / jnp.sqrt(fan_in)
    # Weights in bf16 (MXU-native on v5e/v6e/v7x); biases in f32.
    w_enc = (jax.random.normal(ks[0], (d_in, d_hid), jnp.float32)
             * scale(d_in)).astype(jnp.bfloat16)
    b_enc = jnp.zeros((1, d_hid), jnp.float32)
    w_mu = jax.random.normal(ks[1], (d_hid, d_lat), jnp.float32) * scale(d_hid)
    w_lv = jax.random.normal(ks[2], (d_hid, d_lat), jnp.float32) * scale(d_hid)
    w_mulv = jnp.concatenate([w_mu, w_lv], axis=1).astype(jnp.bfloat16)
    b_mulv = jnp.zeros((1, 2 * d_lat), jnp.float32)
    w_dec1 = (jax.random.normal(ks[3], (d_lat, d_hid), jnp.float32)
              * scale(d_lat)).astype(jnp.bfloat16)
    b_dec1 = jnp.zeros((1, d_hid), jnp.float32)
    w_dec2 = (jax.random.normal(ks[4], (d_hid, d_in), jnp.float32)
              * scale(d_hid)).astype(jnp.bfloat16)
    b_dec2 = jnp.zeros((1, d_in), jnp.float32)
    return (w_enc, b_enc, w_mulv, b_mulv, w_dec1, b_dec1, w_dec2, b_dec2)


if __name__ == "__main__":
    key = jax.random.PRNGKey(0)
    k_x, k_p, k_e = jax.random.split(key, 3)

    B, C, H, W = 2, 4, 16, 16           # small NCHW input
    D_in = C * H * W                    # 1024
    D_hid = 256
    D_lat = 128

    x = jax.random.uniform(k_x, (B, C, H, W), jnp.float32)
    params = init_params(k_p, D_in, D_hid, D_lat)
    eps = jax.random.normal(k_e, (B, D_lat), jnp.float32)

    recon, x_in, mu, logvar = vae_forward(x, params, eps)
    jax.block_until_ready((recon, mu, logvar))

    # Pure-JAX reference of the same (bf16-operand, f32-accumulate) math.
    def ref(x_nchw, eps):
        xf = x_nchw.reshape(B, D_in)
        (w_enc, b_enc, w_mulv, b_mulv, w_d1, b_d1, w_d2, b_d2) = params
        h = jnp.maximum(
            jnp.dot(xf.astype(jnp.bfloat16), w_enc,
                    preferred_element_type=jnp.float32) + b_enc, 0.0)
        mulv = jnp.dot(h.astype(jnp.bfloat16), w_mulv,
                       preferred_element_type=jnp.float32) + b_mulv
        mu_r = mulv[:, :D_lat]
        lv_r = mulv[:, D_lat:]
        z = mu_r + jnp.exp(0.5 * lv_r) * eps
        hd = jnp.maximum(
            jnp.dot(z.astype(jnp.bfloat16), w_d1,
                    preferred_element_type=jnp.float32) + b_d1, 0.0)
        rec = jax.nn.sigmoid(
            jnp.dot(hd.astype(jnp.bfloat16), w_d2,
                    preferred_element_type=jnp.float32) + b_d2)
        return rec.reshape(B, C, H, W), mu_r, lv_r

    rec_r, mu_r, lv_r = ref(x, eps)
    # bf16 matmul operands -> relaxed tolerance vs. pure-f32.
    assert jnp.allclose(recon, rec_r, atol=2e-3, rtol=2e-3)
    assert jnp.allclose(mu, mu_r, atol=2e-3, rtol=2e-3)
    assert jnp.allclose(logvar, lv_r, atol=2e-3, rtol=2e-3)
    assert recon.shape == (B, C, H, W) and mu.shape == (B, D_lat)
    assert logvar.shape == (B, D_lat)
    assert jnp.all(jnp.isfinite(recon)) and jnp.all(jnp.isfinite(logvar))

    print("KERNEL_OK")
</pallas_src>

<mosaic_0001>
module attributes {stable_mosaic.version = 11 : i64} {
  func.func @vae_forward_kernel(%arg0: i32, %arg1: memref<16x1024xf32, #tpu.memory_space<vmem>>, %arg2: memref<16x128xf32, #tpu.memory_space<vmem>>, %arg3: memref<1024x256xbf16, #tpu.memory_space<vmem>>, %arg4: memref<1x256xf32, #tpu.memory_space<vmem>>, %arg5: memref<256x256xbf16, #tpu.memory_space<vmem>>, %arg6: memref<1x256xf32, #tpu.memory_space<vmem>>, %arg7: memref<128x256xbf16, #tpu.memory_space<vmem>>, %arg8: memref<1x256xf32, #tpu.memory_space<vmem>>, %arg9: memref<256x1024xbf16, #tpu.memory_space<vmem>>, %arg10: memref<1x1024xf32, #tpu.memory_space<vmem>>, %arg11: memref<16x1024xf32, #tpu.memory_space<vmem>>, %arg12: memref<16x256xf32, #tpu.memory_space<vmem>>) attributes {dimension_semantics = [#tpu.dimension_semantics<parallel>], iteration_bounds = array<i64: 1>, scalar_prefetch = 0 : i64, scratch_operands = 0 : i64, tpu.core_type = #tpu.core_type<tc>, window_params = [{transform_indices = @transform_0, window_bounds = array<i64: 16, 1024>}, {transform_indices = @transform_1, window_bounds = array<i64: 16, 128>}, {pipeline_mode = #tpu.pipeline_mode<synchronous>, transform_indices = @transform_2, window_bounds = array<i64: 1024, 256>}, {pipeline_mode = #tpu.pipeline_mode<synchronous>, transform_indices = @transform_3, window_bounds = array<i64: 1, 256>}, {pipeline_mode = #tpu.pipeline_mode<synchronous>, transform_indices = @transform_4, window_bounds = array<i64: 256, 256>}, {pipeline_mode = #tpu.pipeline_mode<synchronous>, transform_indices = @transform_5, window_bounds = array<i64: 1, 256>}, {pipeline_mode = #tpu.pipeline_mode<synchronous>, transform_indices = @transform_6, window_bounds = array<i64: 128, 256>}, {pipeline_mode = #tpu.pipeline_mode<synchronous>, transform_indices = @transform_7, window_bounds = array<i64: 1, 256>}, {pipeline_mode = #tpu.pipeline_mode<synchronous>, transform_indices = @transform_8, window_bounds = array<i64: 256, 1024>}, {pipeline_mode = #tpu.pipeline_mode<synchronous>, transform_indices = @transform_9, window_bounds = array<i64: 1, 1024>}, {transform_indices = @transform_10, window_bounds = array<i64: 16, 1024>}, {transform_indices = @transform_11, window_bounds = array<i64: 16, 256>}]} {
    %c0 = arith.constant 0 : index
    %c0_0 = arith.constant 0 : index
    %0 = vector.load %arg1[%c0, %c0_0] : memref<16x1024xf32, #tpu.memory_space<vmem>>, vector<16x1024xf32>
    %1 = arith.truncf %0 : vector<16x1024xf32> to vector<16x1024xbf16>
    %c0_1 = arith.constant 0 : index
    %c0_2 = arith.constant 0 : index
    %2 = vector.load %arg3[%c0_1, %c0_2] : memref<1024x256xbf16, #tpu.memory_space<vmem>>, vector<1024x256xbf16>
    %cst = arith.constant dense<0.000000e+00> : vector<16x256xf32>
    %3 = tpu.matmul %1, %2, %cst {dimension_numbers = #tpu.dot_dimension_numbers<[1], [0], [0], [1], [0, 0, 1, 1], [], []>} : vector<16x1024xbf16>, vector<1024x256xbf16>, vector<16x256xf32> -> vector<16x256xf32>
    %c0_3 = arith.constant 0 : index
    %c0_4 = arith.constant 0 : index
    %4 = vector.load %arg4[%c0_3, %c0_4] : memref<1x256xf32, #tpu.memory_space<vmem>>, vector<1x256xf32>
    %5 = vector.broadcast %4 : vector<1x256xf32> to vector<16x256xf32>
    %6 = arith.addf %3, %5 : vector<16x256xf32>
    %cst_5 = arith.constant 0.000000e+00 : f32
    %7 = vector.broadcast %cst_5 : f32 to vector<16x256xf32>
    %8 = arith.maximumf %6, %7 : vector<16x256xf32>
    %9 = arith.truncf %8 : vector<16x256xf32> to vector<16x256xbf16>
    %c0_6 = arith.constant 0 : index
    %c0_7 = arith.constant 0 : index
    %10 = vector.load %arg5[%c0_6, %c0_7] : memref<256x256xbf16, #tpu.memory_space<vmem>>, vector<256x256xbf16>
    %cst_8 = arith.constant dense<0.000000e+00> : vector<16x256xf32>
    %11 = tpu.matmul %9, %10, %cst_8 {dimension_numbers = #tpu.dot_dimension_numbers<[1], [0], [0], [1], [0, 0, 1, 1], [], []>} : vector<16x256xbf16>, vector<256x256xbf16>, vector<16x256xf32> -> vector<16x256xf32>
    %c0_9 = arith.constant 0 : index
    %c0_10 = arith.constant 0 : index
    %12 = vector.load %arg6[%c0_9, %c0_10] : memref<1x256xf32, #tpu.memory_space<vmem>>, vector<1x256xf32>
    %13 = vector.broadcast %12 : vector<1x256xf32> to vector<16x256xf32>
    %14 = arith.addf %11, %13 : vector<16x256xf32>
    %15 = vector.extract_strided_slice %14 {offsets = [0, 0], sizes = [16, 128], strides = [1, 1]} : vector<16x256xf32> to vector<16x128xf32>
    %16 = vector.extract_strided_slice %14 {offsets = [0, 128], sizes = [16, 128], strides = [1, 1]} : vector<16x256xf32> to vector<16x128xf32>
    %cst_11 = arith.constant 5.000000e-01 : f32
    %17 = vector.broadcast %cst_11 : f32 to vector<16x128xf32>
    %18 = arith.mulf %17, %16 : vector<16x128xf32>
    %19 = math.exp %18 : vector<16x128xf32>
    %c0_12 = arith.constant 0 : index
    %c0_13 = arith.constant 0 : index
    %20 = vector.load %arg2[%c0_12, %c0_13] : memref<16x128xf32, #tpu.memory_space<vmem>>, vector<16x128xf32>
    %21 = arith.mulf %19, %20 : vector<16x128xf32>
    %22 = arith.addf %15, %21 : vector<16x128xf32>
    %23 = arith.truncf %22 : vector<16x128xf32> to vector<16x128xbf16>
    %c0_14 = arith.constant 0 : index
    %c0_15 = arith.constant 0 : index
    %24 = vector.load %arg7[%c0_14, %c0_15] : memref<128x256xbf16, #tpu.memory_space<vmem>>, vector<128x256xbf16>
    %cst_16 = arith.constant dense<0.000000e+00> : vector<16x256xf32>
    %25 = tpu.matmul %23, %24, %cst_16 {dimension_numbers = #tpu.dot_dimension_numbers<[1], [0], [0], [1], [0, 0, 1, 1], [], []>} : vector<16x128xbf16>, vector<128x256xbf16>, vector<16x256xf32> -> vector<16x256xf32>
    %c0_17 = arith.constant 0 : index
    %c0_18 = arith.constant 0 : index
    %26 = vector.load %arg8[%c0_17, %c0_18] : memref<1x256xf32, #tpu.memory_space<vmem>>, vector<1x256xf32>
    %27 = vector.broadcast %26 : vector<1x256xf32> to vector<16x256xf32>
    %28 = arith.addf %25, %27 : vector<16x256xf32>
    %cst_19 = arith.constant 0.000000e+00 : f32
    %29 = vector.broadcast %cst_19 : f32 to vector<16x256xf32>
    %30 = arith.maximumf %28, %29 : vector<16x256xf32>
    %31 = arith.truncf %30 : vector<16x256xf32> to vector<16x256xbf16>
    %c0_20 = arith.constant 0 : index
    %c0_21 = arith.constant 0 : index
    %32 = vector.load %arg9[%c0_20, %c0_21] : memref<256x1024xbf16, #tpu.memory_space<vmem>>, vector<256x1024xbf16>
    %cst_22 = arith.constant dense<0.000000e+00> : vector<16x1024xf32>
    %33 = tpu.matmul %31, %32, %cst_22 {dimension_numbers = #tpu.dot_dimension_numbers<[1], [0], [0], [1], [0, 0, 1, 1], [], []>} : vector<16x256xbf16>, vector<256x1024xbf16>, vector<16x1024xf32> -> vector<16x1024xf32>
    %c0_23 = arith.constant 0 : index
    %c0_24 = arith.constant 0 : index
    %34 = vector.load %arg10[%c0_23, %c0_24] : memref<1x1024xf32, #tpu.memory_space<vmem>>, vector<1x1024xf32>
    %35 = vector.broadcast %34 : vector<1x1024xf32> to vector<16x1024xf32>
    %36 = arith.addf %33, %35 : vector<16x1024xf32>
    %37 = arith.negf %36 : vector<16x1024xf32>
    %38 = math.exp %37 : vector<16x1024xf32>
    %cst_25 = arith.constant 1.000000e+00 : f32
    %39 = vector.broadcast %cst_25 : f32 to vector<16x1024xf32>
    %40 = arith.addf %39, %38 : vector<16x1024xf32>
    %41 = arith.divf %39, %40 : vector<16x1024xf32>
    %c0_26 = arith.constant 0 : index
    %c0_27 = arith.constant 0 : index
    %42 = vector.load %arg11[%c0_26, %c0_27] : memref<16x1024xf32, #tpu.memory_space<vmem>>, vector<16x1024xf32>
    tpu.vector_store %arg11[%c0_26, %c0_27], %41 {strides = array<i32>} : memref<16x1024xf32, #tpu.memory_space<vmem>>, vector<16x1024xf32>,
    %c0_28 = arith.constant 0 : index
    %c0_29 = arith.constant 0 : index
    %43 = vector.load %arg12[%c0_28, %c0_29] : memref<16x256xf32, #tpu.memory_space<vmem>>, vector<16x256xf32>
    tpu.vector_store %arg12[%c0_28, %c0_29], %14 {strides = array<i32>} : memref<16x256xf32, #tpu.memory_space<vmem>>, vector<16x256xf32>,
    return
  }
  func.func @transform_0(%arg0: i32) -> (i32, i32) {
    %c0_i32 = arith.constant 0 : i32
    %c0_i32_0 = arith.constant 0 : i32
    return %arg0, %c0_i32 : i32, i32
  }
  func.func @transform_1(%arg0: i32) -> (i32, i32) {
    %c0_i32 = arith.constant 0 : i32
    %c0_i32_0 = arith.constant 0 : i32
    return %arg0, %c0_i32 : i32, i32
  }
  func.func @transform_2(%arg0: i32) -> (i32, i32) {
    %c0_i32 = arith.constant 0 : i32
    %c0_i32_0 = arith.constant 0 : i32
    %c0_i32_1 = arith.constant 0 : i32
    return %c0_i32, %c0_i32_0 : i32, i32
  }
  func.func @transform_3(%arg0: i32) -> (i32, i32) {
    %c0_i32 = arith.constant 0 : i32
    %c0_i32_0 = arith.constant 0 : i32
    %c0_i32_1 = arith.constant 0 : i32
    return %c0_i32, %c0_i32_0 : i32, i32
  }
  func.func @transform_4(%arg0: i32) -> (i32, i32) {
    %c0_i32 = arith.constant 0 : i32
    %c0_i32_0 = arith.constant 0 : i32
    %c0_i32_1 = arith.constant 0 : i32
    return %c0_i32, %c0_i32_0 : i32, i32
  }
  func.func @transform_5(%arg0: i32) -> (i32, i32) {
    %c0_i32 = arith.constant 0 : i32
    %c0_i32_0 = arith.constant 0 : i32
    %c0_i32_1 = arith.constant 0 : i32
    return %c0_i32, %c0_i32_0 : i32, i32
  }
  func.func @transform_6(%arg0: i32) -> (i32, i32) {
    %c0_i32 = arith.constant 0 : i32
    %c0_i32_0 = arith.constant 0 : i32
    %c0_i32_1 = arith.constant 0 : i32
    return %c0_i32, %c0_i32_0 : i32, i32
  }
  func.func @transform_7(%arg0: i32) -> (i32, i32) {
    %c0_i32 = arith.constant 0 : i32
    %c0_i32_0 = arith.constant 0 : i32
    %c0_i32_1 = arith.constant 0 : i32
    return %c0_i32, %c0_i32_0 : i32, i32
  }
  func.func @transform_8(%arg0: i32) -> (i32, i32) {
    %c0_i32 = arith.constant 0 : i32
    %c0_i32_0 = arith.constant 0 : i32
    %c0_i32_1 = arith.constant 0 : i32
    return %c0_i32, %c0_i32_0 : i32, i32
  }
  func.func @transform_9(%arg0: i32) -> (i32, i32) {
    %c0_i32 = arith.constant 0 : i32
    %c0_i32_0 = arith.constant 0 : i32
    %c0_i32_1 = arith.constant 0 : i32
    return %c0_i32, %c0_i32_0 : i32, i32
  }
  func.func @transform_10(%arg0: i32) -> (i32, i32) {
    %c0_i32 = arith.constant 0 : i32
    %c0_i32_0 = arith.constant 0 : i32
    return %arg0, %c0_i32 : i32, i32
  }
  func.func @transform_11(%arg0: i32) -> (i32, i32) {
    %c0_i32 = arith.constant 0 : i32
    %c0_i32_0 = arith.constant 0 : i32
    return %arg0, %c0_i32 : i32, i32
  }
}

</mosaic_0001>

<llo_original>
// kernel: tpu_custom_call.1
$region0: #{tpu_custom_call.1}
  #allocation0 [shape = 'u32[]', space=smem, size = 0x4, offset = 0x4, fixed_abs, tag = 'smem constant byte address 0x4 - core index']
  #allocation1 [shape = 'u32[144,128]{1,0:T(1,128)}', space=vmem, size = 0x12000, scoped, tag = 'internal scratch']
  %s0 = inlined_call_operand.hbm [shape: f32[16,1024], index: 0, kind: input, shape index: {}]
  %s1 = inlined_call_operand.hbm [shape: f32[16,128], index: 1, kind: input, shape index: {}]
  %s2 = inlined_call_operand.hbm [shape: bf16[1024,256], index: 2, kind: input, shape index: {}]
  %s3 = inlined_call_operand.vmem [shape: f32[1,256], index: 3, kind: input, shape index: {}]
  %s4 = inlined_call_operand.hbm [shape: bf16[256,256], index: 4, kind: input, shape index: {}]
  %s5 = inlined_call_operand.vmem [shape: f32[1,256], index: 5, kind: input, shape index: {}]
  %s6 = inlined_call_operand.hbm [shape: bf16[128,256], index: 6, kind: input, shape index: {}]
  %s7 = inlined_call_operand.vmem [shape: f32[1,256], index: 7, kind: input, shape index: {}]
  %s8 = inlined_call_operand.hbm [shape: bf16[256,1024], index: 8, kind: input, shape index: {}]
  %s9 = inlined_call_operand.vmem [shape: f32[1,1024], index: 9, kind: input, shape index: {}]
  %s10 = inlined_call_operand.hbm [shape: f32[16,1024], index: 10, kind: output, shape index: {0}]
  %s11 = inlined_call_operand.hbm [shape: f32[16,256], index: 11, kind: output, shape index: {1}]
  %12 = xla_tuple %s10, %s11
  %s13 = sld [smem:[#allocation0]]
  $region82: #{tpu_custom_call.1} parent=0
    _
  %s15 = ssub.s32 1, %s13
  %s16 = scalar_select 0, %s15, %s13
  $region1: #{tpu_custom_call.1} parent=0
    #allocation2 [shape = 'u8[65536]{0}', space=vmem, size = 0x10000, scoped, tag = 'input window, operand 0, single buffered']
    #allocation3 [shape = 's32[1]{0}', space=sflag, size = 0x4, scoped, tag = 'scoped memory for tpu_custom_call.1']
    #allocation4 [shape = 's32[1]{0}', space=sflag, size = 0x4, scoped, tag = 'scoped memory for tpu_custom_call.1']
    #allocation5 [shape = 'u8[8192]{0}', space=vmem, size = 0x2000, scoped, tag = 'input window, operand 1, single buffered']
    #allocation6 [shape = 's32[1]{0}', space=sflag, size = 0x4, scoped, tag = 'scoped memory for tpu_custom_call.1']
    #allocation7 [shape = 'u8[524288]{0}', space=vmem, size = 0x80000, scoped, tag = 'input window, operand 2, single buffered']
    #allocation8 [shape = 'u8[131072]{0}', space=vmem, size = 0x20000, scoped, tag = 'input window, operand 4, single buffered']
    #allocation9 [shape = 's32[1]{0}', space=sflag, size = 0x4, scoped, tag = 'scoped memory for tpu_custom_call.1']
    #allocation10 [shape = 'u8[65536]{0}', space=vmem, size = 0x10000, scoped, tag = 'input window, operand 6, single buffered']
    #allocation11 [shape = 'u8[524288]{0}', space=vmem, size = 0x80000, scoped, tag = 'input window, operand 8, single buffered']
    #allocation12 [shape = 's32[1]{0}', space=sflag, size = 0x4, scoped, tag = 'scoped memory for tpu_custom_call.1']
    #allocation13 [shape = 'u8[65536]{0}', space=vmem, size = 0x10000, scoped, tag = 'output window, operand 0, single buffered']
    #allocation14 [shape = 'u8[16384]{0}', space=vmem, size = 0x4000, scoped, tag = 'output window, operand 1, single buffered']
    #allocation15 [shape = 's32[1]{0}', space=sflag, size = 0x4, scoped, tag = 'scoped memory for tpu_custom_call.1']
    %17 = vsyncpa [#allocation3], 0
    %18 = vsyncpa [#allocation6], 0
    %19 = vsyncpa [#allocation9], 0
    %20 = vsyncpa [#allocation12], 0
    %21 = vsyncpa [#allocation4], 0
    %22 = vsyncpa [#allocation15], 0
    // Predicated region
    $region2: #{tpu_custom_call.1} parent=1 // pred_check
      _
    $region3: #{tpu_custom_call.1} parent=1 // pred_check_branch
      %24 = sbr.rel (0) target = $region5
    $region4: #{tpu_custom_call.1} parent=1 // pred_region
      %s26 = ssub.s32 2048, 2048
      %27 = vsyncadd [#allocation3], %s26
      %s28 = sshll.u32 [#allocation2], 4
      %s29 = int_to_ptr.vmem [resolvable:$true] %s28
      %34 = dma.hbm_to_vmem [thread:$0]  %s0, 2048, %s29, [#allocation3], 1024, 1024, 64
    $region5: #{tpu_custom_call.1} parent=1 // pred_fallthru
      _
    // Predicated region
    $region6: #{tpu_custom_call.1} parent=1 // pred_check
      _
    $region7: #{tpu_custom_call.1} parent=1 // pred_check_branch
      %36 = sbr.rel (0) target = $region9
    $region8: #{tpu_custom_call.1} parent=1 // pred_region
      %s38 = ssub.s32 256, 256
      %39 = vsyncadd [#allocation6], %s38
      %s40 = sshll.u32 [#allocation5], 4
      %s41 = int_to_ptr.vmem [resolvable:$true] %s40
      %46 = dma.hbm_to_vmem [thread:$0]  %s1, 256, %s41, [#allocation6], 128, 128, 8
    $region9: #{tpu_custom_call.1} parent=1 // pred_fallthru
      _
    // Predicated region
    $region10: #{tpu_custom_call.1} parent=1 // pred_check
      _
    $region11: #{tpu_custom_call.1} parent=1 // pred_check_branch
      %48 = sbr.rel (0) target = $region13
    $region12: #{tpu_custom_call.1} parent=1 // pred_region
      %s50 = ssub.s32 16384, 16384
      %51 = vsyncadd [#allocation6], %s50
      %s52 = sshll.u32 [#allocation7], 4
      %s53 = int_to_ptr.vmem [resolvable:$true] %s52
      %58 = dma.hbm_to_vmem [thread:$0]  %s2, 16384, %s53, [#allocation6], 128, 128, 8
    $region13: #{tpu_custom_call.1} parent=1 // pred_fallthru
      _
    // Predicated region
    $region14: #{tpu_custom_call.1} parent=1 // pred_check
      _
    $region15: #{tpu_custom_call.1} parent=1 // pred_check_branch
      %60 = sbr.rel (0) target = $region17
    $region16: #{tpu_custom_call.1} parent=1 // pred_region
      _
    $region17: #{tpu_custom_call.1} parent=1 // pred_fallthru
      _
    // Predicated region
    $region18: #{tpu_custom_call.1} parent=1 // pred_check
      _
    $region19: #{tpu_custom_call.1} parent=1 // pred_check_branch
      %62 = sbr.rel (0) target = $region21
    $region20: #{tpu_custom_call.1} parent=1 // pred_region
      %s64 = ssub.s32 4096, 4096
      %65 = vsyncadd [#allocation9], %s64
      %s66 = sshll.u32 [#allocation8], 4
      %s67 = int_to_ptr.vmem [resolvable:$true] %s66
      %72 = dma.hbm_to_vmem [thread:$0]  %s4, 4096, %s67, [#allocation9], 128, 128, 8
    $region21: #{tpu_custom_call.1} parent=1 // pred_fallthru
      _
    // Predicated region
    $region22: #{tpu_custom_call.1} parent=1 // pred_check
      _
    $region23: #{tpu_custom_call.1} parent=1 // pred_check_branch
      %74 = sbr.rel (0) target = $region25
    $region24: #{tpu_custom_call.1} parent=1 // pred_region
      _
    $region25: #{tpu_custom_call.1} parent=1 // pred_fallthru
      _
    // Predicated region
    $region26: #{tpu_custom_call.1} parent=1 // pred_check
      _
    $region27: #{tpu_custom_call.1} parent=1 // pred_check_branch
      %76 = sbr.rel (0) target = $region29
    $region28: #{tpu_custom_call.1} parent=1 // pred_region
      %s78 = ssub.s32 2048, 2048
      %79 = vsyncadd [#allocation9], %s78
      %s80 = sshll.u32 [#allocation10], 4
      %s81 = int_to_ptr.vmem [resolvable:$true] %s80
      %86 = dma.hbm_to_vmem [thread:$0]  %s6, 2048, %s81, [#allocation9], 128, 128, 8
    $region29: #{tpu_custom_call.1} parent=1 // pred_fallthru
      _
    // Predicated region
    $region30: #{tpu_custom_call.1} parent=1 // pred_check
      _
    $region31: #{tpu_custom_call.1} parent=1 // pred_check_branch
      %88 = sbr.rel (0) target = $region33
    $region32: #{tpu_custom_call.1} parent=1 // pred_region
      _
    $region33: #{tpu_custom_call.1} parent=1 // pred_fallthru
      _
    // Predicated region
    $region34: #{tpu_custom_call.1} parent=1 // pred_check
      _
    $region35: #{tpu_custom_call.1} parent=1 // pred_check_branch
      %90 = sbr.rel (0) target = $region37
    $region36: #{tpu_custom_call.1} parent=1 // pred_region
      %s92 = ssub.s32 16384, 16384
      %93 = vsyncadd [#allocation12], %s92
      %s94 = sshll.u32 [#allocation11], 4
      %s95 = int_to_ptr.vmem [resolvable:$true] %s94
      %100 = dma.hbm_to_vmem [thread:$0]  %s8, 16384, %s95, [#allocation12], 512, 512, 32
    $region37: #{tpu_custom_call.1} parent=1 // pred_fallthru
      _
    // Predicated region
    $region38: #{tpu_custom_call.1} parent=1 // pred_check
      _
    $region39: #{tpu_custom_call.1} parent=1 // pred_check_branch
      %102 = sbr.rel (0) target = $region41
    $region40: #{tpu_custom_call.1} parent=1 // pred_region
      _
    $region41: #{tpu_custom_call.1} parent=1 // pred_fallthru
      _
    // Predicated region
    $region42: #{tpu_custom_call.1} parent=1 // pred_check
      _
    $region43: #{tpu_custom_call.1} parent=1 // pred_check_branch
      %104 = sbr.rel (0) target = $region45
    $region44: #{tpu_custom_call.1} parent=1 // pred_region
      %105 = dma.done [#allocation3], 2048
    $region45: #{tpu_custom_call.1} parent=1 // pred_fallthru
      _
    // Predicated region
    $region46: #{tpu_custom_call.1} parent=1 // pred_check
      _
    $region47: #{tpu_custom_call.1} parent=1 // pred_check_branch
      %107 = sbr.rel (0) target = $region49
    $region48: #{tpu_custom_call.1} parent=1 // pred_region
      %108 = dma.done [#allocation6], 256
    $region49: #{tpu_custom_call.1} parent=1 // pred_fallthru
      _
    // Predicated region
    $region50: #{tpu_custom_call.1} parent=1 // pred_check
      _
    $region51: #{tpu_custom_call.1} parent=1 // pred_check_branch
      %110 = sbr.rel (0) target = $region53
    $region52: #{tpu_custom_call.1} parent=1 // pred_region
      %111 = dma.done [#allocation6], 16384
    $region53: #{tpu_custom_call.1} parent=1 // pred_fallthru
      _
    // Predicated region
    $region54: #{tpu_custom_call.1} parent=1 // pred_check
      _
    $region55: #{tpu_custom_call.1} parent=1 // pred_check_branch
      %113 = sbr.rel (0) target = $region57
    $region56: #{tpu_custom_call.1} parent=1 // pred_region
      %114 = dma.done [#allocation9], 4096
    $region57: #{tpu_custom_call.1} parent=1 // pred_fallthru
      _
    // Predicated region
    $region58: #{tpu_custom_call.1} parent=1 // pred_check
      _
    $region59: #{tpu_custom_call.1} parent=1 // pred_check_branch
      %116 = sbr.rel (0) target = $region61
    $region60: #{tpu_custom_call.1} parent=1 // pred_region
      %117 = dma.done [#allocation9], 2048
    $region61: #{tpu_custom_call.1} parent=1 // pred_fallthru
      _
    // Predicated region
    $region62: #{tpu_custom_call.1} parent=1 // pred_check
      _
    $region63: #{tpu_custom_call.1} parent=1 // pred_check_branch
      %119 = sbr.rel (0) target = $region65
    $region64: #{tpu_custom_call.1} parent=1 // pred_region
      %120 = dma.done [#allocation12], 16384
    $region65: #{tpu_custom_call.1} parent=1 // pred_fallthru
      _
    %v122 = vld [vmem:[#allocation2] sm:$0xff]
    %v123 = vld [vmem:[#allocation2 + $0x8] sm:$0xff]
    %v124 = vld [vmem:[#allocation2 + $0x10] sm:$0xff]
    %v125 = vld [vmem:[#allocation2 + $0x18] sm:$0xff]
    %v126 = vld [vmem:[#allocation2 + $0x20] sm:$0xff]
    %v127 = vld [vmem:[#allocation2 + $0x28] sm:$0xff]
    %v128 = vld [vmem:[#allocation2 + $0x30] sm:$0xff]
    %v129 = vld [vmem:[#allocation2 + $0x38] sm:$0xff]
    %v130 = vld [vmem:[#allocation2 + $0x40] sm:$0xff]
    %v131 = vld [vmem:[#allocation2 + $0x48] sm:$0xff]
    %v132 = vld [vmem:[#allocation2 + $0x50] sm:$0xff]
    %v133 = vld [vmem:[#allocation2 + $0x58] sm:$0xff]
    %v134 = vld [vmem:[#allocation2 + $0x60] sm:$0xff]
    %v135 = vld [vmem:[#allocation2 + $0x68] sm:$0xff]
    %v136 = vld [vmem:[#allocation2 + $0x70] sm:$0xff]
    %v137 = vld [vmem:[#allocation2 + $0x78] sm:$0xff]
    %v138 = vpack.c.bf16 %v130, %v122
    %v139 = vpack.c.bf16 %v131, %v123
    %v140 = vpack.c.bf16 %v132, %v124
    %v141 = vpack.c.bf16 %v133, %v125
    %v142 = vpack.c.bf16 %v134, %v126
    %v143 = vpack.c.bf16 %v135, %v127
    %v144 = vpack.c.bf16 %v136, %v128
    %v145 = vpack.c.bf16 %v137, %v129
    %v146 = vld [vmem:[#allocation7] sm:$0xff]
    %v147 = vld [vmem:[#allocation7 + $0x8] sm:$0xff]
    %v148 = vld [vmem:[#allocation7 + $0x10] sm:$0xff]
    %v149 = vld [vmem:[#allocation7 + $0x18] sm:$0xff]
    %v150 = vld [vmem:[#allocation7 + $0x20] sm:$0xff]
    %v151 = vld [vmem:[#allocation7 + $0x28] sm:$0xff]
    %v152 = vld [vmem:[#allocation7 + $0x30] sm:$0xff]
    %v153 = vld [vmem:[#allocation7 + $0x38] sm:$0xff]
    %v154 = vld [vmem:[#allocation7 + $0x40] sm:$0xff]
    %v155 = vld [vmem:[#allocation7 + $0x48] sm:$0xff]
    %v156 = vld [vmem:[#allocation7 + $0x50] sm:$0xff]
    %v157 = vld [vmem:[#allocation7 + $0x58] sm:$0xff]
    %v158 = vld [vmem:[#allocation7 + $0x60] sm:$0xff]
    %v159 = vld [vmem:[#allocation7 + $0x68] sm:$0xff]
    %v160 = vld [vmem:[#allocation7 + $0x70] sm:$0xff]
    %v161 = vld [vmem:[#allocation7 + $0x78] sm:$0xff]
    %v162 = vld [vmem:[#allocation7 + $0x80] sm:$0xff]
    %v163 = vld [vmem:[#allocation7 + $0x88] sm:$0xff]
    %v164 = vld [vmem:[#allocation7 + $0x90] sm:$0xff]
    %v165 = vld [vmem:[#allocation7 + $0x98] sm:$0xff]
    %v166 = vld [vmem:[#allocation7 + $0xa0] sm:$0xff]
    %v167 = vld [vmem:[#allocation7 + $0xa8] sm:$0xff]
    %v168 = vld [vmem:[#allocation7 + $0xb0] sm:$0xff]
    %v169 = vld [vmem:[#allocation7 + $0xb8] sm:$0xff]
    %v170 = vld [vmem:[#allocation7 + $0xc0] sm:$0xff]
    %v171 = vld [vmem:[#allocation7 + $0xc8] sm:$0xff]
    %v172 = vld [vmem:[#allocation7 + $0xd0] sm:$0xff]
    %v173 = vld [vmem:[#allocation7 + $0xd8] sm:$0xff]
    %v174 = vld [vmem:[#allocation7 + $0xe0] sm:$0xff]
    %v175 = vld [vmem:[#allocation7 + $0xe8] sm:$0xff]
    %v176 = vld [vmem:[#allocation7 + $0xf0] sm:$0xff]
    %v177 = vld [vmem:[#allocation7 + $0xf8] sm:$0xff]
    %v178 = vld [vmem:[#allocation7 + $0x100] sm:$0xff]
    %v179 = vld [vmem:[#allocation7 + $0x108] sm:$0xff]
    %v180 = vld [vmem:[#allocation7 + $0x110] sm:$0xff]
    %v181 = vld [vmem:[#allocation7 + $0x118] sm:$0xff]
    %v182 = vld [vmem:[#allocation7 + $0x120] sm:$0xff]
    %v183 = vld [vmem:[#allocation7 + $0x128] sm:$0xff]
    %v184 = vld [vmem:[#allocation7 + $0x130] sm:$0xff]
    %v185 = vld [vmem:[#allocation7 + $0x138] sm:$0xff]
    %v186 = vld [vmem:[#allocation7 + $0x140] sm:$0xff]
    %v187 = vld [vmem:[#allocation7 + $0x148] sm:$0xff]
    %v188 = vld [vmem:[#allocation7 + $0x150] sm:$0xff]
    %v189 = vld [vmem:[#allocation7 + $0x158] sm:$0xff]
    %v190 = vld [vmem:[#allocation7 + $0x160] sm:$0xff]
    %v191 = vld [vmem:[#allocation7 + $0x168] sm:$0xff]
    %v192 = vld [vmem:[#allocation7 + $0x170] sm:$0xff]
    %v193 = vld [vmem:[#allocation7 + $0x178] sm:$0xff]
    %v194 = vld [vmem:[#allocation7 + $0x180] sm:$0xff]
    %v195 = vld [vmem:[#allocation7 + $0x188] sm:$0xff]
    %v196 = vld [vmem:[#allocation7 + $0x190] sm:$0xff]
    %v197 = vld [vmem:[#allocation7 + $0x198] sm:$0xff]
    %v198 = vld [vmem:[#allocation7 + $0x1a0] sm:$0xff]
    %v199 = vld [vmem:[#allocation7 + $0x1a8] sm:$0xff]
    %v200 = vld [vmem:[#allocation7 + $0x1b0] sm:$0xff]
    %v201 = vld [vmem:[#allocation7 + $0x1b8] sm:$0xff]
    %v202 = vld [vmem:[#allocation7 + $0x1c0] sm:$0xff]
    %v203 = vld [vmem:[#allocation7 + $0x1c8] sm:$0xff]
    %v204 = vld [vmem:[#allocation7 + $0x1d0] sm:$0xff]
    %v205 = vld [vmem:[#allocation7 + $0x1d8] sm:$0xff]
    %v206 = vld [vmem:[#allocation7 + $0x1e0] sm:$0xff]
    %v207 = vld [vmem:[#allocation7 + $0x1e8] sm:$0xff]
    %v208 = vld [vmem:[#allocation7 + $0x1f0] sm:$0xff]
    %v209 = vld [vmem:[#allocation7 + $0x1f8] sm:$0xff]
    %v210 = vld [vmem:[#allocation7 + $0x200] sm:$0xff]
    %v211 = vld [vmem:[#allocation7 + $0x208] sm:$0xff]
    %v212 = vld [vmem:[#allocation7 + $0x210] sm:$0xff]
    %v213 = vld [vmem:[#allocation7 + $0x218] sm:$0xff]
    %v214 = vld [vmem:[#allocation7 + $0x220] sm:$0xff]
    %v215 = vld [vmem:[#allocation7 + $0x228] sm:$0xff]
    %v216 = vld [vmem:[#allocation7 + $0x230] sm:$0xff]
    %v217 = vld [vmem:[#allocation7 + $0x238] sm:$0xff]
    %v218 = vld [vmem:[#allocation7 + $0x240] sm:$0xff]
    %v219 = vld [vmem:[#allocation7 + $0x248] sm:$0xff]
    %v220 = vld [vmem:[#allocation7 + $0x250] sm:$0xff]
    %v221 = vld [vmem:[#allocation7 + $0x258] sm:$0xff]
    %v222 = vld [vmem:[#allocation7 + $0x260] sm:$0xff]
    %v223 = vld [vmem:[#allocation7 + $0x268] sm:$0xff]
    %v224 = vld [vmem:[#allocation7 + $0x270] sm:$0xff]
    %v225 = vld [vmem:[#allocation7 + $0x278] sm:$0xff]
    %v226 = vld [vmem:[#allocation7 + $0x280] sm:$0xff]
    %v227 = vld [vmem:[#allocation7 + $0x288] sm:$0xff]
    %v228 = vld [vmem:[#allocation7 + $0x290] sm:$0xff]
    %v229 = vld [vmem:[#allocation7 + $0x298] sm:$0xff]
    %v230 = vld [vmem:[#allocation7 + $0x2a0] sm:$0xff]
    %v231 = vld [vmem:[#allocation7 + $0x2a8] sm:$0xff]
    %v232 = vld [vmem:[#allocation7 + $0x2b0] sm:$0xff]
    %v233 = vld [vmem:[#allocation7 + $0x2b8] sm:$0xff]
    %v234 = vld [vmem:[#allocation7 + $0x2c0] sm:$0xff]
    %v235 = vld [vmem:[#allocation7 + $0x2c8] sm:$0xff]
    %v236 = vld [vmem:[#allocation7 + $0x2d0] sm:$0xff]
    %v237 = vld [vmem:[#allocation7 + $0x2d8] sm:$0xff]
    %v238 = vld [vmem:[#allocation7 + $0x2e0] sm:$0xff]
    %v239 = vld [vmem:[#allocation7 + $0x2e8] sm:$0xff]
    %v240 = vld [vmem:[#allocation7 + $0x2f0] sm:$0xff]
    %v241 = vld [vmem:[#allocation7 + $0x2f8] sm:$0xff]
    %v242 = vld [vmem:[#allocation7 + $0x300] sm:$0xff]
    %v243 = vld [vmem:[#allocation7 + $0x308] sm:$0xff]
    %v244 = vld [vmem:[#allocation7 + $0x310] sm:$0xff]
    %v245 = vld [vmem:[#allocation7 + $0x318] sm:$0xff]
    %v246 = vld [vmem:[#allocation7 + $0x320] sm:$0xff]
    %v247 = vld [vmem:[#allocation7 + $0x328] sm:$0xff]
    %v248 = vld [vmem:[#allocation7 + $0x330] sm:$0xff]
    %v249 = vld [vmem:[#allocation7 + $0x338] sm:$0xff]
    %v250 = vld [vmem:[#allocation7 + $0x340] sm:$0xff]
    %v251 = vld [vmem:[#allocation7 + $0x348] sm:$0xff]
    %v252 = vld [vmem:[#allocation7 + $0x350] sm:$0xff]
    %v253 = vld [vmem:[#allocation7 + $0x358] sm:$0xff]
    %v254 = vld [vmem:[#allocation7 + $0x360] sm:$0xff]
    %v255 = vld [vmem:[#allocation7 + $0x368] sm:$0xff]
    %v256 = vld [vmem:[#allocation7 + $0x370] sm:$0xff]
    %v257 = vld [vmem:[#allocation7 + $0x378] sm:$0xff]
    %v258 = vld [vmem:[#allocation7 + $0x380] sm:$0xff]
    %v259 = vld [vmem:[#allocation7 + $0x388] sm:$0xff]
    %v260 = vld [vmem:[#allocation7 + $0x390] sm:$0xff]
    %v261 = vld [vmem:[#allocation7 + $0x398] sm:$0xff]
    %v262 = vld [vmem:[#allocation7 + $0x3a0] sm:$0xff]
    %v263 = vld [vmem:[#allocation7 + $0x3a8] sm:$0xff]
    %v264 = vld [vmem:[#allocation7 + $0x3b0] sm:$0xff]
    %v265 = vld [vmem:[#allocation7 + $0x3b8] sm:$0xff]
    %v266 = vld [vmem:[#allocation7 + $0x3c0] sm:$0xff]
    %v267 = vld [vmem:[#allocation7 + $0x3c8] sm:$0xff]
    %v268 = vld [vmem:[#allocation7 + $0x3d0] sm:$0xff]
    %v269 = vld [vmem:[#allocation7 + $0x3d8] sm:$0xff]
    %v270 = vld [vmem:[#allocation7 + $0x3e0] sm:$0xff]
    %v271 = vld [vmem:[#allocation7 + $0x3e8] sm:$0xff]
    %v272 = vld [vmem:[#allocation7 + $0x3f0] sm:$0xff]
    %v273 = vld [vmem:[#allocation7 + $0x3f8] sm:$0xff]
    %v274 = vld [vmem:[%s3] sm:$0x3]
    %v276 = vlaneseq
    %v277 = vshrl.u32 %v276, 7
    %v278 = vsub.s32 0, %v277
    %v279 = vrot.slane %v274, %v278
    %v280 = vlaneseq
    %v281 = vshrl.u32 %v280, 7
    %v282 = vsub.s32 1, %v281
    %v283 = vrot.slane %v274, %v282
    %v414 = vunpack.c.l.b16 %v146
    %v415 = vunpack.c.h.b16 %v146
    %v416 = vunpack.c.l.b16 %v147
    %v417 = vunpack.c.h.b16 %v147
    %v418 = vunpack.c.l.b16 %v148
    %v419 = vunpack.c.h.b16 %v148
    %v420 = vunpack.c.l.b16 %v149
    %v421 = vunpack.c.h.b16 %v149
    %v422 = vunpack.c.l.b16 %v150
    %v423 = vunpack.c.h.b16 %v150
    %v424 = vunpack.c.l.b16 %v151
    %v425 = vunpack.c.h.b16 %v151
    %v426 = vunpack.c.l.b16 %v152
    %v427 = vunpack.c.h.b16 %v152
    %v428 = vunpack.c.l.b16 %v153
    %v429 = vunpack.c.h.b16 %v153
    %v430 = vunpack.c.l.b16 %v154
    %v431 = vunpack.c.h.b16 %v154
    %v432 = vunpack.c.l.b16 %v155
    %v433 = vunpack.c.h.b16 %v155
    %v434 = vunpack.c.l.b16 %v156
    %v435 = vunpack.c.h.b16 %v156
    %v436 = vunpack.c.l.b16 %v157
    %v437 = vunpack.c.h.b16 %v157
    %v438 = vunpack.c.l.b16 %v158
    %v439 = vunpack.c.h.b16 %v158
    %v440 = vunpack.c.l.b16 %v159
    %v441 = vunpack.c.h.b16 %v159
    %v442 = vunpack.c.l.b16 %v160
    %v443 = vunpack.c.h.b16 %v160
    %v444 = vunpack.c.l.b16 %v161
    %v445 = vunpack.c.h.b16 %v161
    %v446 = vunpack.c.l.b16 %v162
    %v447 = vunpack.c.h.b16 %v162
    %v448 = vunpack.c.l.b16 %v163
    %v449 = vunpack.c.h.b16 %v163
    %v450 = vunpack.c.l.b16 %v164
    %v451 = vunpack.c.h.b16 %v164
    %v452 = vunpack.c.l.b16 %v165
    %v453 = vunpack.c.h.b16 %v165
    %v454 = vunpack.c.l.b16 %v166
    %v455 = vunpack.c.h.b16 %v166
    %v456 = vunpack.c.l.b16 %v167
    %v457 = vunpack.c.h.b16 %v167
    %v458 = vunpack.c.l.b16 %v168
    %v459 = vunpack.c.h.b16 %v168
    %v460 = vunpack.c.l.b16 %v169
    %v461 = vunpack.c.h.b16 %v169
    %v462 = vunpack.c.l.b16 %v170
    %v463 = vunpack.c.h.b16 %v170
    %v464 = vunpack.c.l.b16 %v171
    %v465 = vunpack.c.h.b16 %v171
    %v466 = vunpack.c.l.b16 %v172
    %v467 = vunpack.c.h.b16 %v172
    %v468 = vunpack.c.l.b16 %v173
    %v469 = vunpack.c.h.b16 %v173
    %v470 = vunpack.c.l.b16 %v174
    %v471 = vunpack.c.h.b16 %v174
    %v472 = vunpack.c.l.b16 %v175
    %v473 = vunpack.c.h.b16 %v175
    %v474 = vunpack.c.l.b16 %v176
    %v475 = vunpack.c.h.b16 %v176
    %v476 = vunpack.c.l.b16 %v177
    %v477 = vunpack.c.h.b16 %v177
    %v478 = vunpack.c.l.b16 %v178
    %v479 = vunpack.c.h.b16 %v178
    %v480 = vunpack.c.l.b16 %v179
    %v481 = vunpack.c.h.b16 %v179
    %v482 = vunpack.c.l.b16 %v180
    %v483 = vunpack.c.h.b16 %v180
    %v484 = vunpack.c.l.b16 %v181
    %v485 = vunpack.c.h.b16 %v181
    %v486 = vunpack.c.l.b16 %v182
    %v487 = vunpack.c.h.b16 %v182
    %v488 = vunpack.c.l.b16 %v183
    %v489 = vunpack.c.h.b16 %v183
    %v490 = vunpack.c.l.b16 %v184
    %v491 = vunpack.c.h.b16 %v184
    %v492 = vunpack.c.l.b16 %v185
    %v493 = vunpack.c.h.b16 %v185
    %v494 = vunpack.c.l.b16 %v186
    %v495 = vunpack.c.h.b16 %v186
    %v496 = vunpack.c.l.b16 %v187
    %v497 = vunpack.c.h.b16 %v187
    %v498 = vunpack.c.l.b16 %v188
    %v499 = vunpack.c.h.b16 %v188
    %v500 = vunpack.c.l.b16 %v189
    %v501 = vunpack.c.h.b16 %v189
    %v502 = vunpack.c.l.b16 %v190
    %v503 = vunpack.c.h.b16 %v190
    %v504 = vunpack.c.l.b16 %v191
    %v505 = vunpack.c.h.b16 %v191
    %v506 = vunpack.c.l.b16 %v192
    %v507 = vunpack.c.h.b16 %v192
    %v508 = vunpack.c.l.b16 %v193
    %v509 = vunpack.c.h.b16 %v193
    %v510 = vunpack.c.l.b16 %v194
    %v511 = vunpack.c.h.b16 %v194
    %v512 = vunpack.c.l.b16 %v195
    %v513 = vunpack.c.h.b16 %v195
    %v514 = vunpack.c.l.b16 %v196
    %v515 = vunpack.c.h.b16 %v196
    %v516 = vunpack.c.l.b16 %v197
    %v517 = vunpack.c.h.b16 %v197
    %v518 = vunpack.c.l.b16 %v198
    %v519 = vunpack.c.h.b16 %v198
    %v520 = vunpack.c.l.b16 %v199
    %v521 = vunpack.c.h.b16 %v199
    %v522 = vunpack.c.l.b16 %v200
    %v523 = vunpack.c.h.b16 %v200
    %v524 = vunpack.c.l.b16 %v201
    %v525 = vunpack.c.h.b16 %v201
    %v526 = vunpack.c.l.b16 %v202
    %v527 = vunpack.c.h.b16 %v202
    %v528 = vunpack.c.l.b16 %v203
    %v529 = vunpack.c.h.b16 %v203
    %v530 = vunpack.c.l.b16 %v204
    %v531 = vunpack.c.h.b16 %v204
    %v532 = vunpack.c.l.b16 %v205
    %v533 = vunpack.c.h.b16 %v205
    %v534 = vunpack.c.l.b16 %v206
    %v535 = vunpack.c.h.b16 %v206
    %v536 = vunpack.c.l.b16 %v207
    %v537 = vunpack.c.h.b16 %v207
    %v538 = vunpack.c.l.b16 %v208
    %v539 = vunpack.c.h.b16 %v208
    %v540 = vunpack.c.l.b16 %v209
    %v541 = vunpack.c.h.b16 %v209
    %v542 = vunpack.c.l.b16 %v210
    %v543 = vunpack.c.h.b16 %v210
    %v544 = vunpack.c.l.b16 %v211
    %v545 = vunpack.c.h.b16 %v211
    %v546 = vunpack.c.l.b16 %v212
    %v547 = vunpack.c.h.b16 %v212
    %v548 = vunpack.c.l.b16 %v213
    %v549 = vunpack.c.h.b16 %v213
    %v550 = vunpack.c.l.b16 %v214
    %v551 = vunpack.c.h.b16 %v214
    %v552 = vunpack.c.l.b16 %v215
    %v553 = vunpack.c.h.b16 %v215
    %v554 = vunpack.c.l.b16 %v216
    %v555 = vunpack.c.h.b16 %v216
    %v556 = vunpack.c.l.b16 %v217
    %v557 = vunpack.c.h.b16 %v217
    %v558 = vunpack.c.l.b16 %v218
    %v559 = vunpack.c.h.b16 %v218
    %v560 = vunpack.c.l.b16 %v219
    %v561 = vunpack.c.h.b16 %v219
    %v562 = vunpack.c.l.b16 %v220
    %v563 = vunpack.c.h.b16 %v220
    %v564 = vunpack.c.l.b16 %v221
    %v565 = vunpack.c.h.b16 %v221
    %v566 = vunpack.c.l.b16 %v222
    %v567 = vunpack.c.h.b16 %v222
    %v568 = vunpack.c.l.b16 %v223
    %v569 = vunpack.c.h.b16 %v223
    %v570 = vunpack.c.l.b16 %v224
    %v571 = vunpack.c.h.b16 %v224
    %v572 = vunpack.c.l.b16 %v225
    %v573 = vunpack.c.h.b16 %v225
    %v574 = vunpack.c.l.b16 %v226
    %v575 = vunpack.c.h.b16 %v226
    %v576 = vunpack.c.l.b16 %v227
    %v577 = vunpack.c.h.b16 %v227
    %v578 = vunpack.c.l.b16 %v228
    %v579 = vunpack.c.h.b16 %v228
    %v580 = vunpack.c.l.b16 %v229
    %v581 = vunpack.c.h.b16 %v229
    %v582 = vunpack.c.l.b16 %v230
    %v583 = vunpack.c.h.b16 %v230
    %v584 = vunpack.c.l.b16 %v231
    %v585 = vunpack.c.h.b16 %v231
    %v586 = vunpack.c.l.b16 %v232
    %v587 = vunpack.c.h.b16 %v232
    %v588 = vunpack.c.l.b16 %v233
    %v589 = vunpack.c.h.b16 %v233
    %v590 = vunpack.c.l.b16 %v234
    %v591 = vunpack.c.h.b16 %v234
    %v592 = vunpack.c.l.b16 %v235
    %v593 = vunpack.c.h.b16 %v235
    %v594 = vunpack.c.l.b16 %v236
    %v595 = vunpack.c.h.b16 %v236
    %v596 = vunpack.c.l.b16 %v237
    %v597 = vunpack.c.h.b16 %v237
    %v598 = vunpack.c.l.b16 %v238
    %v599 = vunpack.c.h.b16 %v238
    %v600 = vunpack.c.l.b16 %v239
    %v601 = vunpack.c.h.b16 %v239
    %v602 = vunpack.c.l.b16 %v240
    %v603 = vunpack.c.h.b16 %v240
    %v604 = vunpack.c.l.b16 %v241
    %v605 = vunpack.c.h.b16 %v241
    %v606 = vunpack.c.l.b16 %v242
    %v607 = vunpack.c.h.b16 %v242
    %v608 = vunpack.c.l.b16 %v243
    %v609 = vunpack.c.h.b16 %v243
    %v610 = vunpack.c.l.b16 %v244
    %v611 = vunpack.c.h.b16 %v244
    %v612 = vunpack.c.l.b16 %v245
    %v613 = vunpack.c.h.b16 %v245
    %v614 = vunpack.c.l.b16 %v246
    %v615 = vunpack.c.h.b16 %v246
    %v616 = vunpack.c.l.b16 %v247
    %v617 = vunpack.c.h.b16 %v247
    %v618 = vunpack.c.l.b16 %v248
    %v619 = vunpack.c.h.b16 %v248
    %v620 = vunpack.c.l.b16 %v249
    %v621 = vunpack.c.h.b16 %v249
    %v622 = vunpack.c.l.b16 %v250
    %v623 = vunpack.c.h.b16 %v250
    %v624 = vunpack.c.l.b16 %v251
    %v625 = vunpack.c.h.b16 %v251
    %v626 = vunpack.c.l.b16 %v252
    %v627 = vunpack.c.h.b16 %v252
    %v628 = vunpack.c.l.b16 %v253
    %v629 = vunpack.c.h.b16 %v253
    %v630 = vunpack.c.l.b16 %v254
    %v631 = vunpack.c.h.b16 %v254
    %v632 = vunpack.c.l.b16 %v255
    %v633 = vunpack.c.h.b16 %v255
    %v634 = vunpack.c.l.b16 %v256
    %v635 = vunpack.c.h.b16 %v256
    %v636 = vunpack.c.l.b16 %v257
    %v637 = vunpack.c.h.b16 %v257
    %v638 = vunpack.c.l.b16 %v258
    %v639 = vunpack.c.h.b16 %v258
    %v640 = vunpack.c.l.b16 %v259
    %v641 = vunpack.c.h.b16 %v259
    %v642 = vunpack.c.l.b16 %v260
    %v643 = vunpack.c.h.b16 %v260
    %v644 = vunpack.c.l.b16 %v261
    %v645 = vunpack.c.h.b16 %v261
    %v646 = vunpack.c.l.b16 %v262
    %v647 = vunpack.c.h.b16 %v262
    %v648 = vunpack.c.l.b16 %v263
    %v649 = vunpack.c.h.b16 %v263
    %v650 = vunpack.c.l.b16 %v264
    %v651 = vunpack.c.h.b16 %v264
    %v652 = vunpack.c.l.b16 %v265
    %v653 = vunpack.c.h.b16 %v265
    %v654 = vunpack.c.l.b16 %v266
    %v655 = vunpack.c.h.b16 %v266
    %v656 = vunpack.c.l.b16 %v267
    %v657 = vunpack.c.h.b16 %v267
    %v658 = vunpack.c.l.b16 %v268
    %v659 = vunpack.c.h.b16 %v268
    %v660 = vunpack.c.l.b16 %v269
    %v661 = vunpack.c.h.b16 %v269
    %v662 = vunpack.c.l.b16 %v270
    %v663 = vunpack.c.h.b16 %v270
    %v664 = vunpack.c.l.b16 %v271
    %v665 = vunpack.c.h.b16 %v271
    %v666 = vunpack.c.l.b16 %v272
    %v667 = vunpack.c.h.b16 %v272
    %v668 = vunpack.c.l.b16 %v273
    %v669 = vunpack.c.h.b16 %v273
    %v670 = vpack.c.b16 %v416, %v414
    %v671 = vpack.c.b16 %v417, %v415
    %v672 = vpack.c.b16 %v420, %v418
    %v673 = vpack.c.b16 %v421, %v419
    %v674 = vpack.c.b16 %v424, %v422
    %v675 = vpack.c.b16 %v425, %v423
    %v676 = vpack.c.b16 %v428, %v426
    %v677 = vpack.c.b16 %v429, %v427
    %v678 = vpack.c.b16 %v432, %v430
    %v679 = vpack.c.b16 %v433, %v431
    %v680 = vpack.c.b16 %v436, %v434
    %v681 = vpack.c.b16 %v437, %v435
    %v682 = vpack.c.b16 %v440, %v438
    %v683 = vpack.c.b16 %v441, %v439
    %v684 = vpack.c.b16 %v444, %v442
    %v685 = vpack.c.b16 %v445, %v443
    %v686 = vpack.c.b16 %v448, %v446
    %v687 = vpack.c.b16 %v449, %v447
    %v688 = vpack.c.b16 %v452, %v450
    %v689 = vpack.c.b16 %v453, %v451
    %v690 = vpack.c.b16 %v456, %v454
    %v691 = vpack.c.b16 %v457, %v455
    %v692 = vpack.c.b16 %v460, %v458
    %v693 = vpack.c.b16 %v461, %v459
    %v694 = vpack.c.b16 %v464, %v462
    %v695 = vpack.c.b16 %v465, %v463
    %v696 = vpack.c.b16 %v468, %v466
    %v697 = vpack.c.b16 %v469, %v467
    %v698 = vpack.c.b16 %v472, %v470
    %v699 = vpack.c.b16 %v473, %v471
    %v700 = vpack.c.b16 %v476, %v474
    %v701 = vpack.c.b16 %v477, %v475
    %v702 = vpack.c.b16 %v480, %v478
    %v703 = vpack.c.b16 %v481, %v479
    %v704 = vpack.c.b16 %v484, %v482
    %v705 = vpack.c.b16 %v485, %v483
    %v706 = vpack.c.b16 %v488, %v486
    %v707 = vpack.c.b16 %v489, %v487
    %v708 = vpack.c.b16 %v492, %v490
    %v709 = vpack.c.b16 %v493, %v491
    %v710 = vpack.c.b16 %v496, %v494
    %v711 = vpack.c.b16 %v497, %v495
    %v712 = vpack.c.b16 %v500, %v498
    %v713 = vpack.c.b16 %v501, %v499
    %v714 = vpack.c.b16 %v504, %v502
    %v715 = vpack.c.b16 %v505, %v503
    %v716 = vpack.c.b16 %v508, %v506
    %v717 = vpack.c.b16 %v509, %v507
    %v718 = vpack.c.b16 %v512, %v510
    %v719 = vpack.c.b16 %v513, %v511
    %v720 = vpack.c.b16 %v516, %v514
    %v721 = vpack.c.b16 %v517, %v515
    %v722 = vpack.c.b16 %v520, %v518
    %v723 = vpack.c.b16 %v521, %v519
    %v724 = vpack.c.b16 %v524, %v522
    %v725 = vpack.c.b16 %v525, %v523
    %v726 = vpack.c.b16 %v528, %v526
    %v727 = vpack.c.b16 %v529, %v527
    %v728 = vpack.c.b16 %v532, %v530
    %v729 = vpack.c.b16 %v533, %v531
    %v730 = vpack.c.b16 %v536, %v534
    %v731 = vpack.c.b16 %v537, %v535
    %v732 = vpack.c.b16 %v540, %v538
    %v733 = vpack.c.b16 %v541, %v539
    %v734 = vpack.c.b16 %v544, %v542
    %v735 = vpack.c.b16 %v545, %v543
    %v736 = vpack.c.b16 %v548, %v546
    %v737 = vpack.c.b16 %v549, %v547
    %v738 = vpack.c.b16 %v552, %v550
    %v739 = vpack.c.b16 %v553, %v551
    %v740 = vpack.c.b16 %v556, %v554
    %v741 = vpack.c.b16 %v557, %v555
    %v742 = vpack.c.b16 %v560, %v558
    %v743 = vpack.c.b16 %v561, %v559
    %v744 = vpack.c.b16 %v564, %v562
    %v745 = vpack.c.b16 %v565, %v563
    %v746 = vpack.c.b16 %v568, %v566
    %v747 = vpack.c.b16 %v569, %v567
    %v748 = vpack.c.b16 %v572, %v570
    %v749 = vpack.c.b16 %v573, %v571
    %v750 = vpack.c.b16 %v576, %v574
    %v751 = vpack.c.b16 %v577, %v575
    %v752 = vpack.c.b16 %v580, %v578
    %v753 = vpack.c.b16 %v581, %v579
    %v754 = vpack.c.b16 %v584, %v582
    %v755 = vpack.c.b16 %v585, %v583
    %v756 = vpack.c.b16 %v588, %v586
    %v757 = vpack.c.b16 %v589, %v587
    %v758 = vpack.c.b16 %v592, %v590
    %v759 = vpack.c.b16 %v593, %v591
    %v760 = vpack.c.b16 %v596, %v594
    %v761 = vpack.c.b16 %v597, %v595
    %v762 = vpack.c.b16 %v600, %v598
    %v763 = vpack.c.b16 %v601, %v599
    %v764 = vpack.c.b16 %v604, %v602
    %v765 = vpack.c.b16 %v605, %v603
    %v766 = vpack.c.b16 %v608, %v606
    %v767 = vpack.c.b16 %v609, %v607
    %v768 = vpack.c.b16 %v612, %v610
    %v769 = vpack.c.b16 %v613, %v611
    %v770 = vpack.c.b16 %v616, %v614
    %v771 = vpack.c.b16 %v617, %v615
    %v772 = vpack.c.b16 %v620, %v618
    %v773 = vpack.c.b16 %v621, %v619
    %v774 = vpack.c.b16 %v624, %v622
    %v775 = vpack.c.b16 %v625, %v623
    %v776 = vpack.c.b16 %v628, %v626
    %v777 = vpack.c.b16 %v629, %v627
    %v778 = vpack.c.b16 %v632, %v630
    %v779 = vpack.c.b16 %v633, %v631
    %v780 = vpack.c.b16 %v636, %v634
    %v781 = vpack.c.b16 %v637, %v635
    %v782 = vpack.c.b16 %v640, %v638
    %v783 = vpack.c.b16 %v641, %v639
    %v784 = vpack.c.b16 %v644, %v642
    %v785 = vpack.c.b16 %v645, %v643
    %v786 = vpack.c.b16 %v648, %v646
    %v787 = vpack.c.b16 %v649, %v647
    %v788 = vpack.c.b16 %v652, %v650
    %v789 = vpack.c.b16 %v653, %v651
    %v790 = vpack.c.b16 %v656, %v654
    %v791 = vpack.c.b16 %v657, %v655
    %v792 = vpack.c.b16 %v660, %v658
    %v793 = vpack.c.b16 %v661, %v659
    %v794 = vpack.c.b16 %v664, %v662
    %v795 = vpack.c.b16 %v665, %v663
    %v796 = vpack.c.b16 %v668, %v666
    %v797 = vpack.c.b16 %v669, %v667
    %926 = vmatprep.subr.bf16.mxu0 %v671
    %927 = vmatpush1.bf16.msra.mxu0 %v670
    %928 = vmatprep.subr.bf16.mxu0 %v673
    %929 = vmatpush1.bf16.msra.mxu0 %v672
    %930 = vmatprep.subr.bf16.mxu0 %v675
    %931 = vmatpush1.bf16.msra.mxu0 %v674
    %932 = vmatprep.subr.bf16.mxu0 %v677
    %933 = vmatpush1.bf16.msra.mxu0 %v676
    %934 = vmatprep.subr.bf16.mxu0 %v679
    %935 = vmatpush1.bf16.msra.mxu0 %v678
    %936 = vmatprep.subr.bf16.mxu0 %v681
    %937 = vmatpush1.bf16.msra.mxu0 %v680
    %938 = vmatprep.subr.bf16.mxu0 %v683
    %939 = vmatpush1.bf16.msra.mxu0 %v682
    %940 = vmatprep.subr.bf16.mxu0 %v685
    %941 = vmatpush1.bf16.msra.mxu0 %v684
    %942 = vmatprep.subr.bf16.mxu0 %v687
    %943 = vmatpush1.bf16.msra.mxu0 %v686
    %944 = vmatprep.subr.bf16.mxu0 %v689
    %945 = vmatpush1.bf16.msra.mxu0 %v688
    %946 = vmatprep.subr.bf16.mxu0 %v691
    %947 = vmatpush1.bf16.msra.mxu0 %v690
    %948 = vmatprep.subr.bf16.mxu0 %v693
    %949 = vmatpush1.bf16.msra.mxu0 %v692
    %950 = vmatprep.subr.bf16.mxu0 %v695
    %951 = vmatpush1.bf16.msra.mxu0 %v694
    %952 = vmatprep.subr.bf16.mxu0 %v697
    %953 = vmatpush1.bf16.msra.mxu0 %v696
    %954 = vmatprep.subr.bf16.mxu0 %v699
    %955 = vmatpush1.bf16.msra.mxu0 %v698
    %956 = vmatprep.subr.bf16.mxu0 %v701
    %957 = vmatpush1.bf16.msra.mxu0 %v700
    %958 = vmatprep.mubr.bf16.mxu0 %v139
    %959 = vmatmul.mubr.bf16.gmra.mrb[0].mxu0 %v138
    %v960 = vpop.f32.mrb[0].mxu0
    %v961 = vadd.f32 %v279, %v960
    %v962 = vpop.f32.mrb[0].mxu0
    %v963 = vadd.f32 %v283, %v962
    %v964 = vpop.f32.mrb[0].mxu0
    %v965 = vadd.f32 %v279, %v964
    %v966 = vpop.f32.mrb[0].mxu0
    %v967 = vadd.f32 %v283, %v966
    %968 = vdwg.mxu0
    %969 = vmatprep.subr.bf16.mxu0 %v703
    %970 = vmatpush1.bf16.msra.mxu0 %v702
    %971 = vmatprep.subr.bf16.mxu0 %v705
    %972 = vmatpush1.bf16.msra.mxu0 %v704
    %973 = vmatprep.subr.bf16.mxu0 %v707
    %974 = vmatpush1.bf16.msra.mxu0 %v706
    %975 = vmatprep.subr.bf16.mxu0 %v709
    %976 = vmatpush1.bf16.msra.mxu0 %v708
    %977 = vmatprep.subr.bf16.mxu0 %v711
    %978 = vmatpush1.bf16.msra.mxu0 %v710
    %979 = vmatprep.subr.bf16.mxu0 %v713
    %980 = vmatpush1.bf16.msra.mxu0 %v712
    %981 = vmatprep.subr.bf16.mxu0 %v715
    %982 = vmatpush1.bf16.msra.mxu0 %v714
    %983 = vmatprep.subr.bf16.mxu0 %v717
    %984 = vmatpush1.bf16.msra.mxu0 %v716
    %985 = vmatprep.subr.bf16.mxu0 %v719
    %986 = vmatpush1.bf16.msra.mxu0 %v718
    %987 = vmatprep.subr.bf16.mxu0 %v721
    %988 = vmatpush1.bf16.msra.mxu0 %v720
    %989 = vmatprep.subr.bf16.mxu0 %v723
    %990 = vmatpush1.bf16.msra.mxu0 %v722
    %991 = vmatprep.subr.bf16.mxu0 %v725
    %992 = vmatpush1.bf16.msra.mxu0 %v724
    %993 = vmatprep.subr.bf16.mxu0 %v727
    %994 = vmatpush1.bf16.msra.mxu0 %v726
    %995 = vmatprep.subr.bf16.mxu0 %v729
    %996 = vmatpush1.bf16.msra.mxu0 %v728
    %997 = vmatprep.subr.bf16.mxu0 %v731
    %998 = vmatpush1.bf16.msra.mxu0 %v730
    %999 = vmatprep.subr.bf16.mxu0 %v733
    %1000 = vmatpush1.bf16.msra.mxu0 %v732
    %1001 = vmatprep.mubr.bf16.mxu0 %v141
    %1002 = vmatmul.mubr.bf16.gmra.mrb[0].mxu0 %v140
    %v1003 = vpop.f32.mrb[0].mxu0
    %v1004 = vadd.f32 %v961, %v1003
    %v1005 = vpop.f32.mrb[0].mxu0
    %v1006 = vadd.f32 %v963, %v1005
    %v1007 = vpop.f32.mrb[0].mxu0
    %v1008 = vadd.f32 %v965, %v1007
    %v1009 = vpop.f32.mrb[0].mxu0
    %v1010 = vadd.f32 %v967, %v1009
    %1011 = vdwg.mxu0
    %1012 = vmatprep.subr.bf16.mxu0 %v735
    %1013 = vmatpush1.bf16.msra.mxu0 %v734
    %1014 = vmatprep.subr.bf16.mxu0 %v737
    %1015 = vmatpush1.bf16.msra.mxu0 %v736
    %1016 = vmatprep.subr.bf16.mxu0 %v739
    %1017 = vmatpush1.bf16.msra.mxu0 %v738
    %1018 = vmatprep.subr.bf16.mxu0 %v741
    %1019 = vmatpush1.bf16.msra.mxu0 %v740
    %1020 = vmatprep.subr.bf16.mxu0 %v743
    %1021 = vmatpush1.bf16.msra.mxu0 %v742
    %1022 = vmatprep.subr.bf16.mxu0 %v745
    %1023 = vmatpush1.bf16.msra.mxu0 %v744
    %1024 = vmatprep.subr.bf16.mxu0 %v747
    %1025 = vmatpush1.bf16.msra.mxu0 %v746
    %1026 = vmatprep.subr.bf16.mxu0 %v749
    %1027 = vmatpush1.bf16.msra.mxu0 %v748
    %1028 = vmatprep.subr.bf16.mxu0 %v751
    %1029 = vmatpush1.bf16.msra.mxu0 %v750
    %1030 = vmatprep.subr.bf16.mxu0 %v753
    %1031 = vmatpush1.bf16.msra.mxu0 %v752
    %1032 = vmatprep.subr.bf16.mxu0 %v755
    %1033 = vmatpush1.bf16.msra.mxu0 %v754
    %1034 = vmatprep.subr.bf16.mxu0 %v757
    %1035 = vmatpush1.bf16.msra.mxu0 %v756
    %1036 = vmatprep.subr.bf16.mxu0 %v759
    %1037 = vmatpush1.bf16.msra.mxu0 %v758
    %1038 = vmatprep.subr.bf16.mxu0 %v761
    %1039 = vmatpush1.bf16.msra.mxu0 %v760
    %1040 = vmatprep.subr.bf16.mxu0 %v763
    %1041 = vmatpush1.bf16.msra.mxu0 %v762
    %1042 = vmatprep.subr.bf16.mxu0 %v765
    %1043 = vmatpush1.bf16.msra.mxu0 %v764
    %1044 = vmatprep.mubr.bf16.mxu0 %v143
    %1045 = vmatmul.mubr.bf16.gmra.mrb[0].mxu0 %v142
    %v1046 = vpop.f32.mrb[0].mxu0
    %v1047 = vadd.f32 %v1004, %v1046
    %v1048 = vpop.f32.mrb[0].mxu0
    %v1049 = vadd.f32 %v1006, %v1048
    %v1050 = vpop.f32.mrb[0].mxu0
    %v1051 = vadd.f32 %v1008, %v1050
    %v1052 = vpop.f32.mrb[0].mxu0
    %v1053 = vadd.f32 %v1010, %v1052
    %1054 = vdwg.mxu0
    %1055 = vmatprep.subr.bf16.mxu0 %v767
    %1056 = vmatpush1.bf16.msra.mxu0 %v766
    %1057 = vmatprep.subr.bf16.mxu0 %v769
    %1058 = vmatpush1.bf16.msra.mxu0 %v768
    %1059 = vmatprep.subr.bf16.mxu0 %v771
    %1060 = vmatpush1.bf16.msra.mxu0 %v770
    %1061 = vmatprep.subr.bf16.mxu0 %v773
    %1062 = vmatpush1.bf16.msra.mxu0 %v772
    %1063 = vmatprep.subr.bf16.mxu0 %v775
    %1064 = vmatpush1.bf16.msra.mxu0 %v774
    %1065 = vmatprep.subr.bf16.mxu0 %v777
    %1066 = vmatpush1.bf16.msra.mxu0 %v776
    %1067 = vmatprep.subr.bf16.mxu0 %v779
    %1068 = vmatpush1.bf16.msra.mxu0 %v778
    %1069 = vmatprep.subr.bf16.mxu0 %v781
    %1070 = vmatpush1.bf16.msra.mxu0 %v780
    %1071 = vmatprep.subr.bf16.mxu0 %v783
    %1072 = vmatpush1.bf16.msra.mxu0 %v782
    %1073 = vmatprep.subr.bf16.mxu0 %v785
    %1074 = vmatpush1.bf16.msra.mxu0 %v784
    %1075 = vmatprep.subr.bf16.mxu0 %v787
    %1076 = vmatpush1.bf16.msra.mxu0 %v786
    %1077 = vmatprep.subr.bf16.mxu0 %v789
    %1078 = vmatpush1.bf16.msra.mxu0 %v788
    %1079 = vmatprep.subr.bf16.mxu0 %v791
    %1080 = vmatpush1.bf16.msra.mxu0 %v790
    %1081 = vmatprep.subr.bf16.mxu0 %v793
    %1082 = vmatpush1.bf16.msra.mxu0 %v792
    %1083 = vmatprep.subr.bf16.mxu0 %v795
    %1084 = vmatpush1.bf16.msra.mxu0 %v794
    %1085 = vmatprep.subr.bf16.mxu0 %v797
    %1086 = vmatpush1.bf16.msra.mxu0 %v796
    %1087 = vmatprep.mubr.bf16.mxu0 %v145
    %1088 = vmatmul.mubr.bf16.gmra.mrb[0].mxu0 %v144
    %v1089 = vpop.f32.mrb[0].mxu0
    %v1090 = vadd.f32 %v1047, %v1089
    %v1091 = vpop.f32.mrb[0].mxu0
    %v1092 = vadd.f32 %v1049, %v1091
    %v1093 = vpop.f32.mrb[0].mxu0
    %v1094 = vadd.f32 %v1051, %v1093
    %v1095 = vpop.f32.mrb[0].mxu0
    %v1096 = vadd.f32 %v1053, %v1095
    %1097 = vdwg.mxu0
    %v1098 = vmax.f32 %v1090, 0.0
    %v1099 = vmax.f32 %v1092, 0.0
    %v1100 = vmax.f32 %v1094, 0.0
    %v1101 = vmax.f32 %v1096, 0.0
    %v1102 = vpack.c.bf16 %v1100, %v1098
    %v1103 = vpack.c.bf16 %v1101, %v1099
    %v1104 = vld [vmem:[#allocation8] sm:$0xff]
    %v1105 = vld [vmem:[#allocation8 + $0x8] sm:$0xff]
    %v1106 = vld [vmem:[#allocation8 + $0x10] sm:$0xff]
    %v1107 = vld [vmem:[#allocation8 + $0x18] sm:$0xff]
    %v1108 = vld [vmem:[#allocation8 + $0x20] sm:$0xff]
    %v1109 = vld [vmem:[#allocation8 + $0x28] sm:$0xff]
    %v1110 = vld [vmem:[#allocation8 + $0x30] sm:$0xff]
    %v1111 = vld [vmem:[#allocation8 + $0x38] sm:$0xff]
    %v1112 = vld [vmem:[#allocation8 + $0x40] sm:$0xff]
    %v1113 = vld [vmem:[#allocation8 + $0x48] sm:$0xff]
    %v1114 = vld [vmem:[#allocation8 + $0x50] sm:$0xff]
    %v1115 = vld [vmem:[#allocation8 + $0x58] sm:$0xff]
    %v1116 = vld [vmem:[#allocation8 + $0x60] sm:$0xff]
    %v1117 = vld [vmem:[#allocation8 + $0x68] sm:$0xff]
    %v1118 = vld [vmem:[#allocation8 + $0x70] sm:$0xff]
    %v1119 = vld [vmem:[#allocation8 + $0x78] sm:$0xff]
    %v1120 = vld [vmem:[#allocation8 + $0x80] sm:$0xff]
    %v1121 = vld [vmem:[#allocation8 + $0x88] sm:$0xff]
    %v1122 = vld [vmem:[#allocation8 + $0x90] sm:$0xff]
    %v1123 = vld [vmem:[#allocation8 + $0x98] sm:$0xff]
    %v1124 = vld [vmem:[#allocation8 + $0xa0] sm:$0xff]
    %v1125 = vld [vmem:[#allocation8 + $0xa8] sm:$0xff]
    %v1126 = vld [vmem:[#allocation8 + $0xb0] sm:$0xff]
    %v1127 = vld [vmem:[#allocation8 + $0xb8] sm:$0xff]
    %v1128 = vld [vmem:[#allocation8 + $0xc0] sm:$0xff]
    %v1129 = vld [vmem:[#allocation8 + $0xc8] sm:$0xff]
    %v1130 = vld [vmem:[#allocation8 + $0xd0] sm:$0xff]
    %v1131 = vld [vmem:[#allocation8 + $0xd8] sm:$0xff]
    %v1132 = vld [vmem:[#allocation8 + $0xe0] sm:$0xff]
    %v1133 = vld [vmem:[#allocation8 + $0xe8] sm:$0xff]
    %v1134 = vld [vmem:[#allocation8 + $0xf0] sm:$0xff]
    %v1135 = vld [vmem:[#allocation8 + $0xf8] sm:$0xff]
    %v1136 = vld [vmem:[%s5] sm:$0x3]
    %v1138 = vlaneseq
    %v1139 = vshrl.u32 %v1138, 7
    %v1140 = vsub.s32 0, %v1139
    %v1141 = vrot.slane %v1136, %v1140
    %v1142 = vlaneseq
    %v1143 = vshrl.u32 %v1142, 7
    %v1144 = vsub.s32 1, %v1143
    %v1145 = vrot.slane %v1136, %v1144
    %v1180 = vunpack.c.l.b16 %v1104
    %v1181 = vunpack.c.h.b16 %v1104
    %v1182 = vunpack.c.l.b16 %v1105
    %v1183 = vunpack.c.h.b16 %v1105
    %v1184 = vunpack.c.l.b16 %v1106
    %v1185 = vunpack.c.h.b16 %v1106
    %v1186 = vunpack.c.l.b16 %v1107
    %v1187 = vunpack.c.h.b16 %v1107
    %v1188 = vunpack.c.l.b16 %v1108
    %v1189 = vunpack.c.h.b16 %v1108
    %v1190 = vunpack.c.l.b16 %v1109
    %v1191 = vunpack.c.h.b16 %v1109
    %v1192 = vunpack.c.l.b16 %v1110
    %v1193 = vunpack.c.h.b16 %v1110
    %v1194 = vunpack.c.l.b16 %v1111
    %v1195 = vunpack.c.h.b16 %v1111
    %v1196 = vunpack.c.l.b16 %v1112
    %v1197 = vunpack.c.h.b16 %v1112
    %v1198 = vunpack.c.l.b16 %v1113
    %v1199 = vunpack.c.h.b16 %v1113
    %v1200 = vunpack.c.l.b16 %v1114
    %v1201 = vunpack.c.h.b16 %v1114
    %v1202 = vunpack.c.l.b16 %v1115
    %v1203 = vunpack.c.h.b16 %v1115
    %v1204 = vunpack.c.l.b16 %v1116
    %v1205 = vunpack.c.h.b16 %v1116
    %v1206 = vunpack.c.l.b16 %v1117
    %v1207 = vunpack.c.h.b16 %v1117
    %v1208 = vunpack.c.l.b16 %v1118
    %v1209 = vunpack.c.h.b16 %v1118
    %v1210 = vunpack.c.l.b16 %v1119
    %v1211 = vunpack.c.h.b16 %v1119
    %v1212 = vunpack.c.l.b16 %v1120
    %v1213 = vunpack.c.h.b16 %v1120
    %v1214 = vunpack.c.l.b16 %v1121
    %v1215 = vunpack.c.h.b16 %v1121
    %v1216 = vunpack.c.l.b16 %v1122
    %v1217 = vunpack.c.h.b16 %v1122
    %v1218 = vunpack.c.l.b16 %v1123
    %v1219 = vunpack.c.h.b16 %v1123
    %v1220 = vunpack.c.l.b16 %v1124
    %v1221 = vunpack.c.h.b16 %v1124
    %v1222 = vunpack.c.l.b16 %v1125
    %v1223 = vunpack.c.h.b16 %v1125
    %v1224 = vunpack.c.l.b16 %v1126
    %v1225 = vunpack.c.h.b16 %v1126
    %v1226 = vunpack.c.l.b16 %v1127
    %v1227 = vunpack.c.h.b16 %v1127
    %v1228 = vunpack.c.l.b16 %v1128
    %v1229 = vunpack.c.h.b16 %v1128
    %v1230 = vunpack.c.l.b16 %v1129
    %v1231 = vunpack.c.h.b16 %v1129
    %v1232 = vunpack.c.l.b16 %v1130
    %v1233 = vunpack.c.h.b16 %v1130
    %v1234 = vunpack.c.l.b16 %v1131
    %v1235 = vunpack.c.h.b16 %v1131
    %v1236 = vunpack.c.l.b16 %v1132
    %v1237 = vunpack.c.h.b16 %v1132
    %v1238 = vunpack.c.l.b16 %v1133
    %v1239 = vunpack.c.h.b16 %v1133
    %v1240 = vunpack.c.l.b16 %v1134
    %v1241 = vunpack.c.h.b16 %v1134
    %v1242 = vunpack.c.l.b16 %v1135
    %v1243 = vunpack.c.h.b16 %v1135
    %v1244 = vpack.c.b16 %v1182, %v1180
    %v1245 = vpack.c.b16 %v1183, %v1181
    %v1246 = vpack.c.b16 %v1186, %v1184
    %v1247 = vpack.c.b16 %v1187, %v1185
    %v1248 = vpack.c.b16 %v1190, %v1188
    %v1249 = vpack.c.b16 %v1191, %v1189
    %v1250 = vpack.c.b16 %v1194, %v1192
    %v1251 = vpack.c.b16 %v1195, %v1193
    %v1252 = vpack.c.b16 %v1198, %v1196
    %v1253 = vpack.c.b16 %v1199, %v1197
    %v1254 = vpack.c.b16 %v1202, %v1200
    %v1255 = vpack.c.b16 %v1203, %v1201
    %v1256 = vpack.c.b16 %v1206, %v1204
    %v1257 = vpack.c.b16 %v1207, %v1205
    %v1258 = vpack.c.b16 %v1210, %v1208
    %v1259 = vpack.c.b16 %v1211, %v1209
    %v1260 = vpack.c.b16 %v1214, %v1212
    %v1261 = vpack.c.b16 %v1215, %v1213
    %v1262 = vpack.c.b16 %v1218, %v1216
    %v1263 = vpack.c.b16 %v1219, %v1217
    %v1264 = vpack.c.b16 %v1222, %v1220
    %v1265 = vpack.c.b16 %v1223, %v1221
    %v1266 = vpack.c.b16 %v1226, %v1224
    %v1267 = vpack.c.b16 %v1227, %v1225
    %v1268 = vpack.c.b16 %v1230, %v1228
    %v1269 = vpack.c.b16 %v1231, %v1229
    %v1270 = vpack.c.b16 %v1234, %v1232
    %v1271 = vpack.c.b16 %v1235, %v1233
    %v1272 = vpack.c.b16 %v1238, %v1236
    %v1273 = vpack.c.b16 %v1239, %v1237
    %v1274 = vpack.c.b16 %v1242, %v1240
    %v1275 = vpack.c.b16 %v1243, %v1241
    %1308 = vmatprep.subr.bf16.mxu0 %v1245
    %1309 = vmatpush1.bf16.msra.mxu0 %v1244
    %1310 = vmatprep.subr.bf16.mxu0 %v1247
    %1311 = vmatpush1.bf16.msra.mxu0 %v1246
    %1312 = vmatprep.subr.bf16.mxu0 %v1249
    %1313 = vmatpush1.bf16.msra.mxu0 %v1248
    %1314 = vmatprep.subr.bf16.mxu0 %v1251
    %1315 = vmatpush1.bf16.msra.mxu0 %v1250
    %1316 = vmatprep.subr.bf16.mxu0 %v1253
    %1317 = vmatpush1.bf16.msra.mxu0 %v1252
    %1318 = vmatprep.subr.bf16.mxu0 %v1255
    %1319 = vmatpush1.bf16.msra.mxu0 %v1254
    %1320 = vmatprep.subr.bf16.mxu0 %v1257
    %1321 = vmatpush1.bf16.msra.mxu0 %v1256
    %1322 = vmatprep.subr.bf16.mxu0 %v1259
    %1323 = vmatpush1.bf16.msra.mxu0 %v1258
    %1324 = vmatprep.subr.bf16.mxu0 %v1261
    %1325 = vmatpush1.bf16.msra.mxu0 %v1260
    %1326 = vmatprep.subr.bf16.mxu0 %v1263
    %1327 = vmatpush1.bf16.msra.mxu0 %v1262
    %1328 = vmatprep.subr.bf16.mxu0 %v1265
    %1329 = vmatpush1.bf16.msra.mxu0 %v1264
    %1330 = vmatprep.subr.bf16.mxu0 %v1267
    %1331 = vmatpush1.bf16.msra.mxu0 %v1266
    %1332 = vmatprep.subr.bf16.mxu0 %v1269
    %1333 = vmatpush1.bf16.msra.mxu0 %v1268
    %1334 = vmatprep.subr.bf16.mxu0 %v1271
    %1335 = vmatpush1.bf16.msra.mxu0 %v1270
    %1336 = vmatprep.subr.bf16.mxu0 %v1273
    %1337 = vmatpush1.bf16.msra.mxu0 %v1272
    %1338 = vmatprep.subr.bf16.mxu0 %v1275
    %1339 = vmatpush1.bf16.msra.mxu0 %v1274
    %1340 = vmatprep.mubr.bf16.mxu0 %v1103
    %1341 = vmatmul.mubr.bf16.gmra.mrb[0].mxu0 %v1102
    %v1342 = vpop.f32.mrb[0].mxu0
    %v1343 = vadd.f32 %v1141, %v1342
    %v1344 = vpop.f32.mrb[0].mxu0
    %v1345 = vadd.f32 %v1145, %v1344
    %v1346 = vpop.f32.mrb[0].mxu0
    %v1347 = vadd.f32 %v1141, %v1346
    %v1348 = vpop.f32.mrb[0].mxu0
    %v1349 = vadd.f32 %v1145, %v1348
    %1350 = vdwg.mxu0
    %v1351 = vmul.f32 %v1345, 0.5
    %v1352 = vmul.f32 %v1349, 0.5
    %v1353 = vmul.f32 %v1351, 1.442695
    %v1354 = vpow.pop %v1353
    %v1355 = vmul.f32 %v1352, 1.442695
    %v1356 = vpow.pop %v1355
    %v1357 = vld [vmem:[#allocation5] sm:$0xff]
    %v1358 = vld [vmem:[#allocation5 + $0x8] sm:$0xff]
    %v1359 = vmul.f32 %v1354, %v1357
    %v1360 = vmul.f32 %v1356, %v1358
    %v1361 = vadd.f32 %v1343, %v1359
    %v1362 = vadd.f32 %v1347, %v1360
    %v1363 = vpack.c.bf16 %v1362, %v1361
    %v1364 = vld [vmem:[#allocation10] sm:$0xff]
    %v1365 = vld [vmem:[#allocation10 + $0x8] sm:$0xff]
    %v1366 = vld [vmem:[#allocation10 + $0x10] sm:$0xff]
    %v1367 = vld [vmem:[#allocation10 + $0x18] sm:$0xff]
    %v1368 = vld [vmem:[#allocation10 + $0x20] sm:$0xff]
    %v1369 = vld [vmem:[#allocation10 + $0x28] sm:$0xff]
    %v1370 = vld [vmem:[#allocation10 + $0x30] sm:$0xff]
    %v1371 = vld [vmem:[#allocation10 + $0x38] sm:$0xff]
    %v1372 = vld [vmem:[#allocation10 + $0x40] sm:$0xff]
    %v1373 = vld [vmem:[#allocation10 + $0x48] sm:$0xff]
    %v1374 = vld [vmem:[#allocation10 + $0x50] sm:$0xff]
    %v1375 = vld [vmem:[#allocation10 + $0x58] sm:$0xff]
    %v1376 = vld [vmem:[#allocation10 + $0x60] sm:$0xff]
    %v1377 = vld [vmem:[#allocation10 + $0x68] sm:$0xff]
    %v1378 = vld [vmem:[#allocation10 + $0x70] sm:$0xff]
    %v1379 = vld [vmem:[#allocation10 + $0x78] sm:$0xff]
    %v1380 = vld [vmem:[%s7] sm:$0x3]
    %v1382 = vlaneseq
    %v1383 = vshrl.u32 %v1382, 7
    %v1384 = vsub.s32 0, %v1383
    %v1385 = vrot.slane %v1380, %v1384
    %v1386 = vlaneseq
    %v1387 = vshrl.u32 %v1386, 7
    %v1388 = vsub.s32 1, %v1387
    %v1389 = vrot.slane %v1380, %v1388
    %v1408 = vunpack.c.l.b16 %v1364
    %v1409 = vunpack.c.h.b16 %v1364
    %v1410 = vunpack.c.l.b16 %v1365
    %v1411 = vunpack.c.h.b16 %v1365
    %v1412 = vunpack.c.l.b16 %v1366
    %v1413 = vunpack.c.h.b16 %v1366
    %v1414 = vunpack.c.l.b16 %v1367
    %v1415 = vunpack.c.h.b16 %v1367
    %v1416 = vunpack.c.l.b16 %v1368
    %v1417 = vunpack.c.h.b16 %v1368
    %v1418 = vunpack.c.l.b16 %v1369
    %v1419 = vunpack.c.h.b16 %v1369
    %v1420 = vunpack.c.l.b16 %v1370
    %v1421 = vunpack.c.h.b16 %v1370
    %v1422 = vunpack.c.l.b16 %v1371
    %v1423 = vunpack.c.h.b16 %v1371
    %v1424 = vunpack.c.l.b16 %v1372
    %v1425 = vunpack.c.h.b16 %v1372
    %v1426 = vunpack.c.l.b16 %v1373
    %v1427 = vunpack.c.h.b16 %v1373
    %v1428 = vunpack.c.l.b16 %v1374
    %v1429 = vunpack.c.h.b16 %v1374
    %v1430 = vunpack.c.l.b16 %v1375
    %v1431 = vunpack.c.h.b16 %v1375
    %v1432 = vunpack.c.l.b16 %v1376
    %v1433 = vunpack.c.h.b16 %v1376
    %v1434 = vunpack.c.l.b16 %v1377
    %v1435 = vunpack.c.h.b16 %v1377
    %v1436 = vunpack.c.l.b16 %v1378
    %v1437 = vunpack.c.h.b16 %v1378
    %v1438 = vunpack.c.l.b16 %v1379
    %v1439 = vunpack.c.h.b16 %v1379
    %v1440 = vpack.c.b16 %v1410, %v1408
    %v1441 = vpack.c.b16 %v1411, %v1409
    %v1442 = vpack.c.b16 %v1414, %v1412
    %v1443 = vpack.c.b16 %v1415, %v1413
    %v1444 = vpack.c.b16 %v1418, %v1416
    %v1445 = vpack.c.b16 %v1419, %v1417
    %v1446 = vpack.c.b16 %v1422, %v1420
    %v1447 = vpack.c.b16 %v1423, %v1421
    %v1448 = vpack.c.b16 %v1426, %v1424
    %v1449 = vpack.c.b16 %v1427, %v1425
    %v1450 = vpack.c.b16 %v1430, %v1428
    %v1451 = vpack.c.b16 %v1431, %v1429
    %v1452 = vpack.c.b16 %v1434, %v1432
    %v1453 = vpack.c.b16 %v1435, %v1433
    %v1454 = vpack.c.b16 %v1438, %v1436
    %v1455 = vpack.c.b16 %v1439, %v1437
    %1472 = vmatprep.subr.bf16.mxu0 %v1441
    %1473 = vmatpush1.bf16.msra.mxu0 %v1440
    %1474 = vmatprep.subr.bf16.mxu0 %v1443
    %1475 = vmatpush1.bf16.msra.mxu0 %v1442
    %1476 = vmatprep.subr.bf16.mxu0 %v1445
    %1477 = vmatpush1.bf16.msra.mxu0 %v1444
    %1478 = vmatprep.subr.bf16.mxu0 %v1447
    %1479 = vmatpush1.bf16.msra.mxu0 %v1446
    %1480 = vmatprep.subr.bf16.mxu0 %v1449
    %1481 = vmatpush1.bf16.msra.mxu0 %v1448
    %1482 = vmatprep.subr.bf16.mxu0 %v1451
    %1483 = vmatpush1.bf16.msra.mxu0 %v1450
    %1484 = vmatprep.subr.bf16.mxu0 %v1453
    %1485 = vmatpush1.bf16.msra.mxu0 %v1452
    %1486 = vmatprep.subr.bf16.mxu0 %v1455
    %1487 = vmatpush1.bf16.msra.mxu0 %v1454
    %1488 = vmatprep.subr.bf16.mxu0 0
    %1489 = vmatpush1.bf16.msra.mxu0 0
    %1490 = vmatprep.subr.bf16.mxu0 0
    %1491 = vmatpush1.bf16.msra.mxu0 0
    %1492 = vmatprep.subr.bf16.mxu0 0
    %1493 = vmatpush1.bf16.msra.mxu0 0
    %1494 = vmatprep.subr.bf16.mxu0 0
    %1495 = vmatpush1.bf16.msra.mxu0 0
    %1496 = vmatprep.subr.bf16.mxu0 0
    %1497 = vmatpush1.bf16.msra.mxu0 0
    %1498 = vmatprep.subr.bf16.mxu0 0
    %1499 = vmatpush1.bf16.msra.mxu0 0
    %1500 = vmatprep.subr.bf16.mxu0 0
    %1501 = vmatpush1.bf16.msra.mxu0 0
    %1502 = vmatprep.subr.bf16.mxu0 0
    %1503 = vmatpush1.bf16.msra.mxu0 0
    %1504 = vmatprep.mubr.bf16.mxu0 0
    %1505 = vmatmul.mubr.bf16.gmra.mrb[0].mxu0 %v1363
    %v1506 = vpop.f32.mrb[0].mxu0
    %v1507 = vadd.f32 %v1385, %v1506
    %v1508 = vpop.f32.mrb[0].mxu0
    %v1509 = vadd.f32 %v1389, %v1508
    %v1510 = vpop.f32.mrb[0].mxu0
    %v1511 = vadd.f32 %v1385, %v1510
    %v1512 = vpop.f32.mrb[0].mxu0
    %v1513 = vadd.f32 %v1389, %v1512
    %1514 = vdwg.mxu0
    %v1515 = vmax.f32 %v1507, 0.0
    %v1516 = vmax.f32 %v1509, 0.0
    %v1517 = vmax.f32 %v1511, 0.0
    %v1518 = vmax.f32 %v1513, 0.0
    %v1519 = vpack.c.bf16 %v1517, %v1515
    %v1520 = vpack.c.bf16 %v1518, %v1516
    %v1521 = vld [vmem:[#allocation11] sm:$0xff]
    %v1522 = vld [vmem:[#allocation11 + $0x8] sm:$0xff]
    %v1523 = vld [vmem:[#allocation11 + $0x10] sm:$0xff]
    %v1524 = vld [vmem:[#allocation11 + $0x18] sm:$0xff]
    %v1525 = vld [vmem:[#allocation11 + $0x20] sm:$0xff]
    %v1526 = vld [vmem:[#allocation11 + $0x28] sm:$0xff]
    %v1527 = vld [vmem:[#allocation11 + $0x30] sm:$0xff]
    %v1528 = vld [vmem:[#allocation11 + $0x38] sm:$0xff]
    %v1529 = vld [vmem:[#allocation11 + $0x40] sm:$0xff]
    %v1530 = vld [vmem:[#allocation11 + $0x48] sm:$0xff]
    %v1531 = vld [vmem:[#allocation11 + $0x50] sm:$0xff]
    %v1532 = vld [vmem:[#allocation11 + $0x58] sm:$0xff]
    %v1533 = vld [vmem:[#allocation11 + $0x60] sm:$0xff]
    %v1534 = vld [vmem:[#allocation11 + $0x68] sm:$0xff]
    %v1535 = vld [vmem:[#allocation11 + $0x70] sm:$0xff]
    %v1536 = vld [vmem:[#allocation11 + $0x78] sm:$0xff]
    %v1537 = vld [vmem:[#allocation11 + $0x80] sm:$0xff]
    %v1538 = vld [vmem:[#allocation11 + $0x88] sm:$0xff]
    %v1539 = vld [vmem:[#allocation11 + $0x90] sm:$0xff]
    %v1540 = vld [vmem:[#allocation11 + $0x98] sm:$0xff]
    %v1541 = vld [vmem:[#allocation11 + $0xa0] sm:$0xff]
    %v1542 = vld [vmem:[#allocation11 + $0xa8] sm:$0xff]
    %v1543 = vld [vmem:[#allocation11 + $0xb0] sm:$0xff]
    %v1544 = vld [vmem:[#allocation11 + $0xb8] sm:$0xff]
    %v1545 = vld [vmem:[#allocation11 + $0xc0] sm:$0xff]
    %v1546 = vld [vmem:[#allocation11 + $0xc8] sm:$0xff]
    %v1547 = vld [vmem:[#allocation11 + $0xd0] sm:$0xff]
    %v1548 = vld [vmem:[#allocation11 + $0xd8] sm:$0xff]
    %v1549 = vld [vmem:[#allocation11 + $0xe0] sm:$0xff]
    %v1550 = vld [vmem:[#allocation11 + $0xe8] sm:$0xff]
    %v1551 = vld [vmem:[#allocation11 + $0xf0] sm:$0xff]
    %v1552 = vld [vmem:[#allocation11 + $0xf8] sm:$0xff]
    %v1553 = vld [vmem:[#allocation11 + $0x100] sm:$0xff]
    %v1554 = vld [vmem:[#allocation11 + $0x108] sm:$0xff]
    %v1555 = vld [vmem:[#allocation11 + $0x110] sm:$0xff]
    %v1556 = vld [vmem:[#allocation11 + $0x118] sm:$0xff]
    %v1557 = vld [vmem:[#allocation11 + $0x120] sm:$0xff]
    %v1558 = vld [vmem:[#allocation11 + $0x128] sm:$0xff]
    %v1559 = vld [vmem:[#allocation11 + $0x130] sm:$0xff]
    %v1560 = vld [vmem:[#allocation11 + $0x138] sm:$0xff]
    %v1561 = vld [vmem:[#allocation11 + $0x140] sm:$0xff]
    %v1562 = vld [vmem:[#allocation11 + $0x148] sm:$0xff]
    %v1563 = vld [vmem:[#allocation11 + $0x150] sm:$0xff]
    %v1564 = vld [vmem:[#allocation11 + $0x158] sm:$0xff]
    %v1565 = vld [vmem:[#allocation11 + $0x160] sm:$0xff]
    %v1566 = vld [vmem:[#allocation11 + $0x168] sm:$0xff]
    %v1567 = vld [vmem:[#allocation11 + $0x170] sm:$0xff]
    %v1568 = vld [vmem:[#allocation11 + $0x178] sm:$0xff]
    %v1569 = vld [vmem:[#allocation11 + $0x180] sm:$0xff]
    %v1570 = vld [vmem:[#allocation11 + $0x188] sm:$0xff]
    %v1571 = vld [vmem:[#allocation11 + $0x190] sm:$0xff]
    %v1572 = vld [vmem:[#allocation11 + $0x198] sm:$0xff]
    %v1573 = vld [vmem:[#allocation11 + $0x1a0] sm:$0xff]
    %v1574 = vld [vmem:[#allocation11 + $0x1a8] sm:$0xff]
    %v1575 = vld [vmem:[#allocation11 + $0x1b0] sm:$0xff]
    %v1576 = vld [vmem:[#allocation11 + $0x1b8] sm:$0xff]
    %v1577 = vld [vmem:[#allocation11 + $0x1c0] sm:$0xff]
    %v1578 = vld [vmem:[#allocation11 + $0x1c8] sm:$0xff]
    %v1579 = vld [vmem:[#allocation11 + $0x1d0] sm:$0xff]
    %v1580 = vld [vmem:[#allocation11 + $0x1d8] sm:$0xff]
    %v1581 = vld [vmem:[#allocation11 + $0x1e0] sm:$0xff]
    %v1582 = vld [vmem:[#allocation11 + $0x1e8] sm:$0xff]
    %v1583 = vld [vmem:[#allocation11 + $0x1f0] sm:$0xff]
    %v1584 = vld [vmem:[#allocation11 + $0x1f8] sm:$0xff]
    %v1585 = vld [vmem:[#allocation11 + $0x200] sm:$0xff]
    %v1586 = vld [vmem:[#allocation11 + $0x208] sm:$0xff]
    %v1587 = vld [vmem:[#allocation11 + $0x210] sm:$0xff]
    %v1588 = vld [vmem:[#allocation11 + $0x218] sm:$0xff]
    %v1589 = vld [vmem:[#allocation11 + $0x220] sm:$0xff]
    %v1590 = vld [vmem:[#allocation11 + $0x228] sm:$0xff]
    %v1591 = vld [vmem:[#allocation11 + $0x230] sm:$0xff]
    %v1592 = vld [vmem:[#allocation11 + $0x238] sm:$0xff]
    %v1593 = vld [vmem:[#allocation11 + $0x240] sm:$0xff]
    %v1594 = vld [vmem:[#allocation11 + $0x248] sm:$0xff]
    %v1595 = vld [vmem:[#allocation11 + $0x250] sm:$0xff]
    %v1596 = vld [vmem:[#allocation11 + $0x258] sm:$0xff]
    %v1597 = vld [vmem:[#allocation11 + $0x260] sm:$0xff]
    %v1598 = vld [vmem:[#allocation11 + $0x268] sm:$0xff]
    %v1599 = vld [vmem:[#allocation11 + $0x270] sm:$0xff]
    %v1600 = vld [vmem:[#allocation11 + $0x278] sm:$0xff]
    %v1601 = vld [vmem:[#allocation11 + $0x280] sm:$0xff]
    %v1602 = vld [vmem:[#allocation11 + $0x288] sm:$0xff]
    %v1603 = vld [vmem:[#allocation11 + $0x290] sm:$0xff]
    %v1604 = vld [vmem:[#allocation11 + $0x298] sm:$0xff]
    %v1605 = vld [vmem:[#allocation11 + $0x2a0] sm:$0xff]
    %v1606 = vld [vmem:[#allocation11 + $0x2a8] sm:$0xff]
    %v1607 = vld [vmem:[#allocation11 + $0x2b0] sm:$0xff]
    %v1608 = vld [vmem:[#allocation11 + $0x2b8] sm:$0xff]
    %v1609 = vld [vmem:[#allocation11 + $0x2c0] sm:$0xff]
    %v1610 = vld [vmem:[#allocation11 + $0x2c8] sm:$0xff]
    %v1611 = vld [vmem:[#allocation11 + $0x2d0] sm:$0xff]
    %v1612 = vld [vmem:[#allocation11 + $0x2d8] sm:$0xff]
    %v1613 = vld [vmem:[#allocation11 + $0x2e0] sm:$0xff]
    %v1614 = vld [vmem:[#allocation11 + $0x2e8] sm:$0xff]
    %v1615 = vld [vmem:[#allocation11 + $0x2f0] sm:$0xff]
    %v1616 = vld [vmem:[#allocation11 + $0x2f8] sm:$0xff]
    %v1617 = vld [vmem:[#allocation11 + $0x300] sm:$0xff]
    %v1618 = vld [vmem:[#allocation11 + $0x308] sm:$0xff]
    %v1619 = vld [vmem:[#allocation11 + $0x310] sm:$0xff]
    %v1620 = vld [vmem:[#allocation11 + $0x318] sm:$0xff]
    %v1621 = vld [vmem:[#allocation11 + $0x320] sm:$0xff]
    %v1622 = vld [vmem:[#allocation11 + $0x328] sm:$0xff]
    %v1623 = vld [vmem:[#allocation11 + $0x330] sm:$0xff]
    %v1624 = vld [vmem:[#allocation11 + $0x338] sm:$0xff]
    %v1625 = vld [vmem:[#allocation11 + $0x340] sm:$0xff]
    %v1626 = vld [vmem:[#allocation11 + $0x348] sm:$0xff]
    %v1627 = vld [vmem:[#allocation11 + $0x350] sm:$0xff]
    %v1628 = vld [vmem:[#allocation11 + $0x358] sm:$0xff]
    %v1629 = vld [vmem:[#allocation11 + $0x360] sm:$0xff]
    %v1630 = vld [vmem:[#allocation11 + $0x368] sm:$0xff]
    %v1631 = vld [vmem:[#allocation11 + $0x370] sm:$0xff]
    %v1632 = vld [vmem:[#allocation11 + $0x378] sm:$0xff]
    %v1633 = vld [vmem:[#allocation11 + $0x380] sm:$0xff]
    %v1634 = vld [vmem:[#allocation11 + $0x388] sm:$0xff]
    %v1635 = vld [vmem:[#allocation11 + $0x390] sm:$0xff]
    %v1636 = vld [vmem:[#allocation11 + $0x398] sm:$0xff]
    %v1637 = vld [vmem:[#allocation11 + $0x3a0] sm:$0xff]
    %v1638 = vld [vmem:[#allocation11 + $0x3a8] sm:$0xff]
    %v1639 = vld [vmem:[#allocation11 + $0x3b0] sm:$0xff]
    %v1640 = vld [vmem:[#allocation11 + $0x3b8] sm:$0xff]
    %v1641 = vld [vmem:[#allocation11 + $0x3c0] sm:$0xff]
    %v1642 = vld [vmem:[#allocation11 + $0x3c8] sm:$0xff]
    %v1643 = vld [vmem:[#allocation11 + $0x3d0] sm:$0xff]
    %v1644 = vld [vmem:[#allocation11 + $0x3d8] sm:$0xff]
    %v1645 = vld [vmem:[#allocation11 + $0x3e0] sm:$0xff]
    %v1646 = vld [vmem:[#allocation11 + $0x3e8] sm:$0xff]
    %v1647 = vld [vmem:[#allocation11 + $0x3f0] sm:$0xff]
    %v1648 = vld [vmem:[#allocation11 + $0x3f8] sm:$0xff]
    %v1649 = vld [vmem:[%s9] sm:$0xff]
    %v1651 = vlaneseq
    %v1652 = vshrl.u32 %v1651, 7
    %v1653 = vsub.s32 0, %v1652
    %v1654 = vrot.slane %v1649, %v1653
    %v1655 = vlaneseq
    %v1656 = vshrl.u32 %v1655, 7
    %v1657 = vsub.s32 1, %v1656
    %v1658 = vrot.slane %v1649, %v1657
    %v1659 = vlaneseq
    %v1660 = vshrl.u32 %v1659, 7
    %v1661 = vsub.s32 2, %v1660
    %v1662 = vrot.slane %v1649, %v1661
    %v1663 = vlaneseq
    %v1664 = vshrl.u32 %v1663, 7
    %v1665 = vsub.s32 3, %v1664
    %v1666 = vrot.slane %v1649, %v1665
    %v1667 = vlaneseq
    %v1668 = vshrl.u32 %v1667, 7
    %v1669 = vsub.s32 4, %v1668
    %v1670 = vrot.slane %v1649, %v1669
    %v1671 = vlaneseq
    %v1672 = vshrl.u32 %v1671, 7
    %v1673 = vsub.s32 5, %v1672
    %v1674 = vrot.slane %v1649, %v1673
    %v1675 = vlaneseq
    %v1676 = vshrl.u32 %v1675, 7
    %v1677 = vsub.s32 6, %v1676
    %v1678 = vrot.slane %v1649, %v1677
    %v1679 = vlaneseq
    %v1680 = vshrl.u32 %v1679, 7
    %v1681 = vsub.s32 7, %v1680
    %v1682 = vrot.slane %v1649, %v1681
    %v1819 = vunpack.c.l.b16 %v1521
    %v1820 = vunpack.c.h.b16 %v1521
    %v1821 = vunpack.c.l.b16 %v1522
    %v1822 = vunpack.c.h.b16 %v1522
    %v1823 = vunpack.c.l.b16 %v1523
    %v1824 = vunpack.c.h.b16 %v1523
    %v1825 = vunpack.c.l.b16 %v1524
    %v1826 = vunpack.c.h.b16 %v1524
    %v1827 = vunpack.c.l.b16 %v1525
    %v1828 = vunpack.c.h.b16 %v1525
    %v1829 = vunpack.c.l.b16 %v1526
    %v1830 = vunpack.c.h.b16 %v1526
    %v1831 = vunpack.c.l.b16 %v1527
    %v1832 = vunpack.c.h.b16 %v1527
    %v1833 = vunpack.c.l.b16 %v1528
    %v1834 = vunpack.c.h.b16 %v1528
    %v1835 = vunpack.c.l.b16 %v1529
    %v1836 = vunpack.c.h.b16 %v1529
    %v1837 = vunpack.c.l.b16 %v1530
    %v1838 = vunpack.c.h.b16 %v1530
    %v1839 = vunpack.c.l.b16 %v1531
    %v1840 = vunpack.c.h.b16 %v1531
    %v1841 = vunpack.c.l.b16 %v1532
    %v1842 = vunpack.c.h.b16 %v1532
    %v1843 = vunpack.c.l.b16 %v1533
    %v1844 = vunpack.c.h.b16 %v1533
    %v1845 = vunpack.c.l.b16 %v1534
    %v1846 = vunpack.c.h.b16 %v1534
    %v1847 = vunpack.c.l.b16 %v1535
    %v1848 = vunpack.c.h.b16 %v1535
    %v1849 = vunpack.c.l.b16 %v1536
    %v1850 = vunpack.c.h.b16 %v1536
    %v1851 = vunpack.c.l.b16 %v1537
    %v1852 = vunpack.c.h.b16 %v1537
    %v1853 = vunpack.c.l.b16 %v1538
    %v1854 = vunpack.c.h.b16 %v1538
    %v1855 = vunpack.c.l.b16 %v1539
    %v1856 = vunpack.c.h.b16 %v1539
    %v1857 = vunpack.c.l.b16 %v1540
    %v1858 = vunpack.c.h.b16 %v1540
    %v1859 = vunpack.c.l.b16 %v1541
    %v1860 = vunpack.c.h.b16 %v1541
    %v1861 = vunpack.c.l.b16 %v1542
    %v1862 = vunpack.c.h.b16 %v1542
    %v1863 = vunpack.c.l.b16 %v1543
    %v1864 = vunpack.c.h.b16 %v1543
    %v1865 = vunpack.c.l.b16 %v1544
    %v1866 = vunpack.c.h.b16 %v1544
    %v1867 = vunpack.c.l.b16 %v1545
    %v1868 = vunpack.c.h.b16 %v1545
    %v1869 = vunpack.c.l.b16 %v1546
    %v1870 = vunpack.c.h.b16 %v1546
    %v1871 = vunpack.c.l.b16 %v1547
    %v1872 = vunpack.c.h.b16 %v1547
    %v1873 = vunpack.c.l.b16 %v1548
    %v1874 = vunpack.c.h.b16 %v1548
    %v1875 = vunpack.c.l.b16 %v1549
    %v1876 = vunpack.c.h.b16 %v1549
    %v1877 = vunpack.c.l.b16 %v1550
    %v1878 = vunpack.c.h.b16 %v1550
    %v1879 = vunpack.c.l.b16 %v1551
    %v1880 = vunpack.c.h.b16 %v1551
    %v1881 = vunpack.c.l.b16 %v1552
    %v1882 = vunpack.c.h.b16 %v1552
    %v1883 = vunpack.c.l.b16 %v1553
    %v1884 = vunpack.c.h.b16 %v1553
    %v1885 = vunpack.c.l.b16 %v1554
    %v1886 = vunpack.c.h.b16 %v1554
    %v1887 = vunpack.c.l.b16 %v1555
    %v1888 = vunpack.c.h.b16 %v1555
    %v1889 = vunpack.c.l.b16 %v1556
    %v1890 = vunpack.c.h.b16 %v1556
    %v1891 = vunpack.c.l.b16 %v1557
    %v1892 = vunpack.c.h.b16 %v1557
    %v1893 = vunpack.c.l.b16 %v1558
    %v1894 = vunpack.c.h.b16 %v1558
    %v1895 = vunpack.c.l.b16 %v1559
    %v1896 = vunpack.c.h.b16 %v1559
    %v1897 = vunpack.c.l.b16 %v1560
    %v1898 = vunpack.c.h.b16 %v1560
    %v1899 = vunpack.c.l.b16 %v1561
    %v1900 = vunpack.c.h.b16 %v1561
    %v1901 = vunpack.c.l.b16 %v1562
    %v1902 = vunpack.c.h.b16 %v1562
    %v1903 = vunpack.c.l.b16 %v1563
    %v1904 = vunpack.c.h.b16 %v1563
    %v1905 = vunpack.c.l.b16 %v1564
    %v1906 = vunpack.c.h.b16 %v1564
    %v1907 = vunpack.c.l.b16 %v1565
    %v1908 = vunpack.c.h.b16 %v1565
    %v1909 = vunpack.c.l.b16 %v1566
    %v1910 = vunpack.c.h.b16 %v1566
    %v1911 = vunpack.c.l.b16 %v1567
    %v1912 = vunpack.c.h.b16 %v1567
    %v1913 = vunpack.c.l.b16 %v1568
    %v1914 = vunpack.c.h.b16 %v1568
    %v1915 = vunpack.c.l.b16 %v1569
    %v1916 = vunpack.c.h.b16 %v1569
    %v1917 = vunpack.c.l.b16 %v1570
    %v1918 = vunpack.c.h.b16 %v1570
    %v1919 = vunpack.c.l.b16 %v1571
    %v1920 = vunpack.c.h.b16 %v1571
    %v1921 = vunpack.c.l.b16 %v1572
    %v1922 = vunpack.c.h.b16 %v1572
    %v1923 = vunpack.c.l.b16 %v1573
    %v1924 = vunpack.c.h.b16 %v1573
    %v1925 = vunpack.c.l.b16 %v1574
    %v1926 = vunpack.c.h.b16 %v1574
    %v1927 = vunpack.c.l.b16 %v1575
    %v1928 = vunpack.c.h.b16 %v1575
    %v1929 = vunpack.c.l.b16 %v1576
    %v1930 = vunpack.c.h.b16 %v1576
    %v1931 = vunpack.c.l.b16 %v1577
    %v1932 = vunpack.c.h.b16 %v1577
    %v1933 = vunpack.c.l.b16 %v1578
    %v1934 = vunpack.c.h.b16 %v1578
    %v1935 = vunpack.c.l.b16 %v1579
    %v1936 = vunpack.c.h.b16 %v1579
    %v1937 = vunpack.c.l.b16 %v1580
    %v1938 = vunpack.c.h.b16 %v1580
    %v1939 = vunpack.c.l.b16 %v1581
    %v1940 = vunpack.c.h.b16 %v1581
    %v1941 = vunpack.c.l.b16 %v1582
    %v1942 = vunpack.c.h.b16 %v1582
    %v1943 = vunpack.c.l.b16 %v1583
    %v1944 = vunpack.c.h.b16 %v1583
    %v1945 = vunpack.c.l.b16 %v1584
    %v1946 = vunpack.c.h.b16 %v1584
    %v1947 = vunpack.c.l.b16 %v1585
    %v1948 = vunpack.c.h.b16 %v1585
    %v1949 = vunpack.c.l.b16 %v1586
    %v1950 = vunpack.c.h.b16 %v1586
    %v1951 = vunpack.c.l.b16 %v1587
    %v1952 = vunpack.c.h.b16 %v1587
    %v1953 = vunpack.c.l.b16 %v1588
    %v1954 = vunpack.c.h.b16 %v1588
    %v1955 = vunpack.c.l.b16 %v1589
    %v1956 = vunpack.c.h.b16 %v1589
    %v1957 = vunpack.c.l.b16 %v1590
    %v1958 = vunpack.c.h.b16 %v1590
    %v1959 = vunpack.c.l.b16 %v1591
    %v1960 = vunpack.c.h.b16 %v1591
    %v1961 = vunpack.c.l.b16 %v1592
    %v1962 = vunpack.c.h.b16 %v1592
    %v1963 = vunpack.c.l.b16 %v1593
    %v1964 = vunpack.c.h.b16 %v1593
    %v1965 = vunpack.c.l.b16 %v1594
    %v1966 = vunpack.c.h.b16 %v1594
    %v1967 = vunpack.c.l.b16 %v1595
    %v1968 = vunpack.c.h.b16 %v1595
    %v1969 = vunpack.c.l.b16 %v1596
    %v1970 = vunpack.c.h.b16 %v1596
    %v1971 = vunpack.c.l.b16 %v1597
    %v1972 = vunpack.c.h.b16 %v1597
    %v1973 = vunpack.c.l.b16 %v1598
    %v1974 = vunpack.c.h.b16 %v1598
    %v1975 = vunpack.c.l.b16 %v1599
    %v1976 = vunpack.c.h.b16 %v1599
    %v1977 = vunpack.c.l.b16 %v1600
    %v1978 = vunpack.c.h.b16 %v1600
    %v1979 = vunpack.c.l.b16 %v1601
    %v1980 = vunpack.c.h.b16 %v1601
    %v1981 = vunpack.c.l.b16 %v1602
    %v1982 = vunpack.c.h.b16 %v1602
    %v1983 = vunpack.c.l.b16 %v1603
    %v1984 = vunpack.c.h.b16 %v1603
    %v1985 = vunpack.c.l.b16 %v1604
    %v1986 = vunpack.c.h.b16 %v1604
    %v1987 = vunpack.c.l.b16 %v1605
    %v1988 = vunpack.c.h.b16 %v1605
    %v1989 = vunpack.c.l.b16 %v1606
    %v1990 = vunpack.c.h.b16 %v1606
    %v1991 = vunpack.c.l.b16 %v1607
    %v1992 = vunpack.c.h.b16 %v1607
    %v1993 = vunpack.c.l.b16 %v1608
    %v1994 = vunpack.c.h.b16 %v1608
    %v1995 = vunpack.c.l.b16 %v1609
    %v1996 = vunpack.c.h.b16 %v1609
    %v1997 = vunpack.c.l.b16 %v1610
    %v1998 = vunpack.c.h.b16 %v1610
    %v1999 = vunpack.c.l.b16 %v1611
    %v2000 = vunpack.c.h.b16 %v1611
    %v2001 = vunpack.c.l.b16 %v1612
    %v2002 = vunpack.c.h.b16 %v1612
    %v2003 = vunpack.c.l.b16 %v1613
    %v2004 = vunpack.c.h.b16 %v1613
    %v2005 = vunpack.c.l.b16 %v1614
    %v2006 = vunpack.c.h.b16 %v1614
    %v2007 = vunpack.c.l.b16 %v1615
    %v2008 = vunpack.c.h.b16 %v1615
    %v2009 = vunpack.c.l.b16 %v1616
    %v2010 = vunpack.c.h.b16 %v1616
    %v2011 = vunpack.c.l.b16 %v1617
    %v2012 = vunpack.c.h.b16 %v1617
    %v2013 = vunpack.c.l.b16 %v1618
    %v2014 = vunpack.c.h.b16 %v1618
    %v2015 = vunpack.c.l.b16 %v1619
    %v2016 = vunpack.c.h.b16 %v1619
    %v2017 = vunpack.c.l.b16 %v1620
    %v2018 = vunpack.c.h.b16 %v1620
    %v2019 = vunpack.c.l.b16 %v1621
    %v2020 = vunpack.c.h.b16 %v1621
    %v2021 = vunpack.c.l.b16 %v1622
    %v2022 = vunpack.c.h.b16 %v1622
    %v2023 = vunpack.c.l.b16 %v1623
    %v2024 = vunpack.c.h.b16 %v1623
    %v2025 = vunpack.c.l.b16 %v1624
    %v2026 = vunpack.c.h.b16 %v1624
    %v2027 = vunpack.c.l.b16 %v1625
    %v2028 = vunpack.c.h.b16 %v1625
    %v2029 = vunpack.c.l.b16 %v1626
    %v2030 = vunpack.c.h.b16 %v1626
    %v2031 = vunpack.c.l.b16 %v1627
    %v2032 = vunpack.c.h.b16 %v1627
    %v2033 = vunpack.c.l.b16 %v1628
    %v2034 = vunpack.c.h.b16 %v1628
    %v2035 = vunpack.c.l.b16 %v1629
    %v2036 = vunpack.c.h.b16 %v1629
    %v2037 = vunpack.c.l.b16 %v1630
    %v2038 = vunpack.c.h.b16 %v1630
    %v2039 = vunpack.c.l.b16 %v1631
    %v2040 = vunpack.c.h.b16 %v1631
    %v2041 = vunpack.c.l.b16 %v1632
    %v2042 = vunpack.c.h.b16 %v1632
    %v2043 = vunpack.c.l.b16 %v1633
    %v2044 = vunpack.c.h.b16 %v1633
    %v2045 = vunpack.c.l.b16 %v1634
    %v2046 = vunpack.c.h.b16 %v1634
    %v2047 = vunpack.c.l.b16 %v1635
    %v2048 = vunpack.c.h.b16 %v1635
    %v2049 = vunpack.c.l.b16 %v1636
    %v2050 = vunpack.c.h.b16 %v1636
    %v2051 = vunpack.c.l.b16 %v1637
    %v2052 = vunpack.c.h.b16 %v1637
    %v2053 = vunpack.c.l.b16 %v1638
    %v2054 = vunpack.c.h.b16 %v1638
    %v2055 = vunpack.c.l.b16 %v1639
    %v2056 = vunpack.c.h.b16 %v1639
    %v2057 = vunpack.c.l.b16 %v1640
    %v2058 = vunpack.c.h.b16 %v1640
    %v2059 = vunpack.c.l.b16 %v1641
    %v2060 = vunpack.c.h.b16 %v1641
    %v2061 = vunpack.c.l.b16 %v1642
    %v2062 = vunpack.c.h.b16 %v1642
    %v2063 = vunpack.c.l.b16 %v1643
    %v2064 = vunpack.c.h.b16 %v1643
    %v2065 = vunpack.c.l.b16 %v1644
    %v2066 = vunpack.c.h.b16 %v1644
    %v2067 = vunpack.c.l.b16 %v1645
    %v2068 = vunpack.c.h.b16 %v1645
    %v2069 = vunpack.c.l.b16 %v1646
    %v2070 = vunpack.c.h.b16 %v1646
    %v2071 = vunpack.c.l.b16 %v1647
    %v2072 = vunpack.c.h.b16 %v1647
    %v2073 = vunpack.c.l.b16 %v1648
    %v2074 = vunpack.c.h.b16 %v1648
    %v2075 = vpack.c.b16 %v1827, %v1819
    %v2076 = vpack.c.b16 %v1828, %v1820
    %v2077 = vpack.c.b16 %v1829, %v1821
    %v2078 = vpack.c.b16 %v1830, %v1822
    %v2079 = vpack.c.b16 %v1831, %v1823
    %v2080 = vpack.c.b16 %v1832, %v1824
    %v2081 = vpack.c.b16 %v1833, %v1825
    %v2082 = vpack.c.b16 %v1834, %v1826
    %v2083 = vpack.c.b16 %v1843, %v1835
    %v2084 = vpack.c.b16 %v1844, %v1836
    %v2085 = vpack.c.b16 %v1845, %v1837
    %v2086 = vpack.c.b16 %v1846, %v1838
    %v2087 = vpack.c.b16 %v1847, %v1839
    %v2088 = vpack.c.b16 %v1848, %v1840
    %v2089 = vpack.c.b16 %v1849, %v1841
    %v2090 = vpack.c.b16 %v1850, %v1842
    %v2091 = vpack.c.b16 %v1859, %v1851
    %v2092 = vpack.c.b16 %v1860, %v1852
    %v2093 = vpack.c.b16 %v1861, %v1853
    %v2094 = vpack.c.b16 %v1862, %v1854
    %v2095 = vpack.c.b16 %v1863, %v1855
    %v2096 = vpack.c.b16 %v1864, %v1856
    %v2097 = vpack.c.b16 %v1865, %v1857
    %v2098 = vpack.c.b16 %v1866, %v1858
    %v2099 = vpack.c.b16 %v1875, %v1867
    %v2100 = vpack.c.b16 %v1876, %v1868
    %v2101 = vpack.c.b16 %v1877, %v1869
    %v2102 = vpack.c.b16 %v1878, %v1870
    %v2103 = vpack.c.b16 %v1879, %v1871
    %v2104 = vpack.c.b16 %v1880, %v1872
    %v2105 = vpack.c.b16 %v1881, %v1873
    %v2106 = vpack.c.b16 %v1882, %v1874
    %v2107 = vpack.c.b16 %v1891, %v1883
    %v2108 = vpack.c.b16 %v1892, %v1884
    %v2109 = vpack.c.b16 %v1893, %v1885
    %v2110 = vpack.c.b16 %v1894, %v1886
    %v2111 = vpack.c.b16 %v1895, %v1887
    %v2112 = vpack.c.b16 %v1896, %v1888
    %v2113 = vpack.c.b16 %v1897, %v1889
    %v2114 = vpack.c.b16 %v1898, %v1890
    %v2115 = vpack.c.b16 %v1907, %v1899
    %v2116 = vpack.c.b16 %v1908, %v1900
    %v2117 = vpack.c.b16 %v1909, %v1901
    %v2118 = vpack.c.b16 %v1910, %v1902
    %v2119 = vpack.c.b16 %v1911, %v1903
    %v2120 = vpack.c.b16 %v1912, %v1904
    %v2121 = vpack.c.b16 %v1913, %v1905
    %v2122 = vpack.c.b16 %v1914, %v1906
    %v2123 = vpack.c.b16 %v1923, %v1915
    %v2124 = vpack.c.b16 %v1924, %v1916
    %v2125 = vpack.c.b16 %v1925, %v1917
    %v2126 = vpack.c.b16 %v1926, %v1918
    %v2127 = vpack.c.b16 %v1927, %v1919
    %v2128 = vpack.c.b16 %v1928, %v1920
    %v2129 = vpack.c.b16 %v1929, %v1921
    %v2130 = vpack.c.b16 %v1930, %v1922
    %v2131 = vpack.c.b16 %v1939, %v1931
    %v2132 = vpack.c.b16 %v1940, %v1932
    %v2133 = vpack.c.b16 %v1941, %v1933
    %v2134 = vpack.c.b16 %v1942, %v1934
    %v2135 = vpack.c.b16 %v1943, %v1935
    %v2136 = vpack.c.b16 %v1944, %v1936
    %v2137 = vpack.c.b16 %v1945, %v1937
    %v2138 = vpack.c.b16 %v1946, %v1938
    %v2139 = vpack.c.b16 %v1955, %v1947
    %v2140 = vpack.c.b16 %v1956, %v1948
    %v2141 = vpack.c.b16 %v1957, %v1949
    %v2142 = vpack.c.b16 %v1958, %v1950
    %v2143 = vpack.c.b16 %v1959, %v1951
    %v2144 = vpack.c.b16 %v1960, %v1952
    %v2145 = vpack.c.b16 %v1961, %v1953
    %v2146 = vpack.c.b16 %v1962, %v1954
    %v2147 = vpack.c.b16 %v1971, %v1963
    %v2148 = vpack.c.b16 %v1972, %v1964
    %v2149 = vpack.c.b16 %v1973, %v1965
    %v2150 = vpack.c.b16 %v1974, %v1966
    %v2151 = vpack.c.b16 %v1975, %v1967
    %v2152 = vpack.c.b16 %v1976, %v1968
    %v2153 = vpack.c.b16 %v1977, %v1969
    %v2154 = vpack.c.b16 %v1978, %v1970
    %v2155 = vpack.c.b16 %v1987, %v1979
    %v2156 = vpack.c.b16 %v1988, %v1980
    %v2157 = vpack.c.b16 %v1989, %v1981
    %v2158 = vpack.c.b16 %v1990, %v1982
    %v2159 = vpack.c.b16 %v1991, %v1983
    %v2160 = vpack.c.b16 %v1992, %v1984
    %v2161 = vpack.c.b16 %v1993, %v1985
    %v2162 = vpack.c.b16 %v1994, %v1986
    %v2163 = vpack.c.b16 %v2003, %v1995
    %v2164 = vpack.c.b16 %v2004, %v1996
    %v2165 = vpack.c.b16 %v2005, %v1997
    %v2166 = vpack.c.b16 %v2006, %v1998
    %v2167 = vpack.c.b16 %v2007, %v1999
    %v2168 = vpack.c.b16 %v2008, %v2000
    %v2169 = vpack.c.b16 %v2009, %v2001
    %v2170 = vpack.c.b16 %v2010, %v2002
    %v2171 = vpack.c.b16 %v2019, %v2011
    %v2172 = vpack.c.b16 %v2020, %v2012
    %v2173 = vpack.c.b16 %v2021, %v2013
    %v2174 = vpack.c.b16 %v2022, %v2014
    %v2175 = vpack.c.b16 %v2023, %v2015
    %v2176 = vpack.c.b16 %v2024, %v2016
    %v2177 = vpack.c.b16 %v2025, %v2017
    %v2178 = vpack.c.b16 %v2026, %v2018
    %v2179 = vpack.c.b16 %v2035, %v2027
    %v2180 = vpack.c.b16 %v2036, %v2028
    %v2181 = vpack.c.b16 %v2037, %v2029
    %v2182 = vpack.c.b16 %v2038, %v2030
    %v2183 = vpack.c.b16 %v2039, %v2031
    %v2184 = vpack.c.b16 %v2040, %v2032
    %v2185 = vpack.c.b16 %v2041, %v2033
    %v2186 = vpack.c.b16 %v2042, %v2034
    %v2187 = vpack.c.b16 %v2051, %v2043
    %v2188 = vpack.c.b16 %v2052, %v2044
    %v2189 = vpack.c.b16 %v2053, %v2045
    %v2190 = vpack.c.b16 %v2054, %v2046
    %v2191 = vpack.c.b16 %v2055, %v2047
    %v2192 = vpack.c.b16 %v2056, %v2048
    %v2193 = vpack.c.b16 %v2057, %v2049
    %v2194 = vpack.c.b16 %v2058, %v2050
    %v2195 = vpack.c.b16 %v2067, %v2059
    %v2196 = vpack.c.b16 %v2068, %v2060
    %v2197 = vpack.c.b16 %v2069, %v2061
    %v2198 = vpack.c.b16 %v2070, %v2062
    %v2199 = vpack.c.b16 %v2071, %v2063
    %v2200 = vpack.c.b16 %v2072, %v2064
    %v2201 = vpack.c.b16 %v2073, %v2065
    %v2202 = vpack.c.b16 %v2074, %v2066
    %2331 = vmatprep.subr.bf16.mxu0 %v2076
    %2332 = vmatpush1.bf16.msra.mxu0 %v2075
    %2333 = vmatprep.subr.bf16.mxu0 %v2084
    %2334 = vmatpush1.bf16.msra.mxu0 %v2083
    %2335 = vmatprep.subr.bf16.mxu0 %v2092
    %2336 = vmatpush1.bf16.msra.mxu0 %v2091
    %2337 = vmatprep.subr.bf16.mxu0 %v2100
    %2338 = vmatpush1.bf16.msra.mxu0 %v2099
    %2339 = vmatprep.subr.bf16.mxu0 %v2108
    %2340 = vmatpush1.bf16.msra.mxu0 %v2107
    %2341 = vmatprep.subr.bf16.mxu0 %v2116
    %2342 = vmatpush1.bf16.msra.mxu0 %v2115
    %2343 = vmatprep.subr.bf16.mxu0 %v2124
    %2344 = vmatpush1.bf16.msra.mxu0 %v2123
    %2345 = vmatprep.subr.bf16.mxu0 %v2132
    %2346 = vmatpush1.bf16.msra.mxu0 %v2131
    %2347 = vmatprep.subr.bf16.mxu0 %v2140
    %2348 = vmatpush1.bf16.msra.mxu0 %v2139
    %2349 = vmatprep.subr.bf16.mxu0 %v2148
    %2350 = vmatpush1.bf16.msra.mxu0 %v2147
    %2351 = vmatprep.subr.bf16.mxu0 %v2156
    %2352 = vmatpush1.bf16.msra.mxu0 %v2155
    %2353 = vmatprep.subr.bf16.mxu0 %v2164
    %2354 = vmatpush1.bf16.msra.mxu0 %v2163
    %2355 = vmatprep.subr.bf16.mxu0 %v2172
    %2356 = vmatpush1.bf16.msra.mxu0 %v2171
    %2357 = vmatprep.subr.bf16.mxu0 %v2180
    %2358 = vmatpush1.bf16.msra.mxu0 %v2179
    %2359 = vmatprep.subr.bf16.mxu0 %v2188
    %2360 = vmatpush1.bf16.msra.mxu0 %v2187
    %2361 = vmatprep.subr.bf16.mxu0 %v2196
    %2362 = vmatpush1.bf16.msra.mxu0 %v2195
    %2363 = vmatprep.mubr.bf16.mxu0 %v1520
    %2364 = vmatmul.mubr.bf16.gmra.mrb[0].mxu0 %v1519
    %v2365 = vpop.f32.mrb[0].mxu0
    %v2366 = vadd.f32 %v1654, %v2365
    %v2367 = vpop.f32.mrb[0].mxu0
    %v2368 = vadd.f32 %v1658, %v2367
    %v2369 = vpop.f32.mrb[0].mxu0
    %v2370 = vadd.f32 %v1654, %v2369
    %v2371 = vpop.f32.mrb[0].mxu0
    %v2372 = vadd.f32 %v1658, %v2371
    %2373 = vdwg.mxu0
    %2374 = vmatprep.subr.bf16.mxu0 %v2078
    %2375 = vmatpush1.bf16.msra.mxu0 %v2077
    %2376 = vmatprep.subr.bf16.mxu0 %v2086
    %2377 = vmatpush1.bf16.msra.mxu0 %v2085
    %2378 = vmatprep.subr.bf16.mxu0 %v2094
    %2379 = vmatpush1.bf16.msra.mxu0 %v2093
    %2380 = vmatprep.subr.bf16.mxu0 %v2102
    %2381 = vmatpush1.bf16.msra.mxu0 %v2101
    %2382 = vmatprep.subr.bf16.mxu0 %v2110
    %2383 = vmatpush1.bf16.msra.mxu0 %v2109
    %2384 = vmatprep.subr.bf16.mxu0 %v2118
    %2385 = vmatpush1.bf16.msra.mxu0 %v2117
    %2386 = vmatprep.subr.bf16.mxu0 %v2126
    %2387 = vmatpush1.bf16.msra.mxu0 %v2125
    %2388 = vmatprep.subr.bf16.mxu0 %v2134
    %2389 = vmatpush1.bf16.msra.mxu0 %v2133
    %2390 = vmatprep.subr.bf16.mxu0 %v2142
    %2391 = vmatpush1.bf16.msra.mxu0 %v2141
    %2392 = vmatprep.subr.bf16.mxu0 %v2150
    %2393 = vmatpush1.bf16.msra.mxu0 %v2149
    %2394 = vmatprep.subr.bf16.mxu0 %v2158
    %2395 = vmatpush1.bf16.msra.mxu0 %v2157
    %2396 = vmatprep.subr.bf16.mxu0 %v2166
    %2397 = vmatpush1.bf16.msra.mxu0 %v2165
    %2398 = vmatprep.subr.bf16.mxu0 %v2174
    %2399 = vmatpush1.bf16.msra.mxu0 %v2173
    %2400 = vmatprep.subr.bf16.mxu0 %v2182
    %2401 = vmatpush1.bf16.msra.mxu0 %v2181
    %2402 = vmatprep.subr.bf16.mxu0 %v2190
    %2403 = vmatpush1.bf16.msra.mxu0 %v2189
    %2404 = vmatprep.subr.bf16.mxu0 %v2198
    %2405 = vmatpush1.bf16.msra.mxu0 %v2197
    %2406 = vmatprep.mubr.bf16.mxu0 %v1520
    %2407 = vmatmul.mubr.bf16.gmra.mrb[0].mxu0 %v1519
    %v2408 = vpop.f32.mrb[0].mxu0
    %v2409 = vadd.f32 %v1662, %v2408
    %v2410 = vpop.f32.mrb[0].mxu0
    %v2411 = vadd.f32 %v1666, %v2410
    %v2412 = vpop.f32.mrb[0].mxu0
    %v2413 = vadd.f32 %v1662, %v2412
    %v2414 = vpop.f32.mrb[0].mxu0
    %v2415 = vadd.f32 %v1666, %v2414
    %2416 = vdwg.mxu0
    %2417 = vmatprep.subr.bf16.mxu0 %v2080
    %2418 = vmatpush1.bf16.msra.mxu0 %v2079
    %2419 = vmatprep.subr.bf16.mxu0 %v2088
    %2420 = vmatpush1.bf16.msra.mxu0 %v2087
    %2421 = vmatprep.subr.bf16.mxu0 %v2096
    %2422 = vmatpush1.bf16.msra.mxu0 %v2095
    %2423 = vmatprep.subr.bf16.mxu0 %v2104
    %2424 = vmatpush1.bf16.msra.mxu0 %v2103
    %2425 = vmatprep.subr.bf16.mxu0 %v2112
    %2426 = vmatpush1.bf16.msra.mxu0 %v2111
    %2427 = vmatprep.subr.bf16.mxu0 %v2120
    %2428 = vmatpush1.bf16.msra.mxu0 %v2119
    %2429 = vmatprep.subr.bf16.mxu0 %v2128
    %2430 = vmatpush1.bf16.msra.mxu0 %v2127
    %2431 = vmatprep.subr.bf16.mxu0 %v2136
    %2432 = vmatpush1.bf16.msra.mxu0 %v2135
    %2433 = vmatprep.subr.bf16.mxu0 %v2144
    %2434 = vmatpush1.bf16.msra.mxu0 %v2143
    %2435 = vmatprep.subr.bf16.mxu0 %v2152
    %2436 = vmatpush1.bf16.msra.mxu0 %v2151
    %2437 = vmatprep.subr.bf16.mxu0 %v2160
    %2438 = vmatpush1.bf16.msra.mxu0 %v2159
    %2439 = vmatprep.subr.bf16.mxu0 %v2168
    %2440 = vmatpush1.bf16.msra.mxu0 %v2167
    %2441 = vmatprep.subr.bf16.mxu0 %v2176
    %2442 = vmatpush1.bf16.msra.mxu0 %v2175
    %2443 = vmatprep.subr.bf16.mxu0 %v2184
    %2444 = vmatpush1.bf16.msra.mxu0 %v2183
    %2445 = vmatprep.subr.bf16.mxu0 %v2192
    %2446 = vmatpush1.bf16.msra.mxu0 %v2191
    %2447 = vmatprep.subr.bf16.mxu0 %v2200
    %2448 = vmatpush1.bf16.msra.mxu0 %v2199
    %2449 = vmatprep.mubr.bf16.mxu0 %v1520
    %2450 = vmatmul.mubr.bf16.gmra.mrb[0].mxu0 %v1519
    %v2451 = vpop.f32.mrb[0].mxu0
    %v2452 = vadd.f32 %v1670, %v2451
    %v2453 = vpop.f32.mrb[0].mxu0
    %v2454 = vadd.f32 %v1674, %v2453
    %v2455 = vpop.f32.mrb[0].mxu0
    %v2456 = vadd.f32 %v1670, %v2455
    %v2457 = vpop.f32.mrb[0].mxu0
    %v2458 = vadd.f32 %v1674, %v2457
    %2459 = vdwg.mxu0
    %2460 = vmatprep.subr.bf16.mxu0 %v2082
    %2461 = vmatpush1.bf16.msra.mxu0 %v2081
    %2462 = vmatprep.subr.bf16.mxu0 %v2090
    %2463 = vmatpush1.bf16.msra.mxu0 %v2089
    %2464 = vmatprep.subr.bf16.mxu0 %v2098
    %2465 = vmatpush1.bf16.msra.mxu0 %v2097
    %2466 = vmatprep.subr.bf16.mxu0 %v2106
    %2467 = vmatpush1.bf16.msra.mxu0 %v2105
    %2468 = vmatprep.subr.bf16.mxu0 %v2114
    %2469 = vmatpush1.bf16.msra.mxu0 %v2113
    %2470 = vmatprep.subr.bf16.mxu0 %v2122
    %2471 = vmatpush1.bf16.msra.mxu0 %v2121
    %2472 = vmatprep.subr.bf16.mxu0 %v2130
    %2473 = vmatpush1.bf16.msra.mxu0 %v2129
    %2474 = vmatprep.subr.bf16.mxu0 %v2138
    %2475 = vmatpush1.bf16.msra.mxu0 %v2137
    %2476 = vmatprep.subr.bf16.mxu0 %v2146
    %2477 = vmatpush1.bf16.msra.mxu0 %v2145
    %2478 = vmatprep.subr.bf16.mxu0 %v2154
    %2479 = vmatpush1.bf16.msra.mxu0 %v2153
    %2480 = vmatprep.subr.bf16.mxu0 %v2162
    %2481 = vmatpush1.bf16.msra.mxu0 %v2161
    %2482 = vmatprep.subr.bf16.mxu0 %v2170
    %2483 = vmatpush1.bf16.msra.mxu0 %v2169
    %2484 = vmatprep.subr.bf16.mxu0 %v2178
    %2485 = vmatpush1.bf16.msra.mxu0 %v2177
    %2486 = vmatprep.subr.bf16.mxu0 %v2186
    %2487 = vmatpush1.bf16.msra.mxu0 %v2185
    %2488 = vmatprep.subr.bf16.mxu0 %v2194
    %2489 = vmatpush1.bf16.msra.mxu0 %v2193
    %2490 = vmatprep.subr.bf16.mxu0 %v2202
    %2491 = vmatpush1.bf16.msra.mxu0 %v2201
    %2492 = vmatprep.mubr.bf16.mxu0 %v1520
    %2493 = vmatmul.mubr.bf16.gmra.mrb[0].mxu0 %v1519
    %v2494 = vpop.f32.mrb[0].mxu0
    %v2495 = vadd.f32 %v1678, %v2494
    %v2496 = vpop.f32.mrb[0].mxu0
    %v2497 = vadd.f32 %v1682, %v2496
    %v2498 = vpop.f32.mrb[0].mxu0
    %v2499 = vadd.f32 %v1678, %v2498
    %v2500 = vpop.f32.mrb[0].mxu0
    %v2501 = vadd.f32 %v1682, %v2500
    %2502 = vdwg.mxu0
    %v2503 = vxor.u32 %v2366, 2147483648
    %v2504 = vxor.u32 %v2368, 2147483648
    %v2505 = vxor.u32 %v2409, 2147483648
    %v2506 = vxor.u32 %v2411, 2147483648
    %v2507 = vxor.u32 %v2452, 2147483648
    %v2508 = vxor.u32 %v2454, 2147483648
    %v2509 = vxor.u32 %v2495, 2147483648
    %v2510 = vxor.u32 %v2497, 2147483648
    %v2511 = vxor.u32 %v2370, 2147483648
    %v2512 = vxor.u32 %v2372, 2147483648
    %v2513 = vxor.u32 %v2413, 2147483648
    %v2514 = vxor.u32 %v2415, 2147483648
    %v2515 = vxor.u32 %v2456, 2147483648
    %v2516 = vxor.u32 %v2458, 2147483648
    %v2517 = vxor.u32 %v2499, 2147483648
    %v2518 = vxor.u32 %v2501, 2147483648
    %v2519 = vmul.f32 %v2503, 1.442695
    %v2520 = vpow.pop %v2519
    %v2521 = vmul.f32 %v2504, 1.442695
    %v2522 = vpow.pop %v2521
    %v2523 = vmul.f32 %v2505, 1.442695
    %v2524 = vpow.pop %v2523
    %v2525 = vmul.f32 %v2506, 1.442695
    %v2526 = vpow.pop %v2525
    %v2527 = vmul.f32 %v2507, 1.442695
    %v2528 = vpow.pop %v2527
    %v2529 = vmul.f32 %v2508, 1.442695
    %v2530 = vpow.pop %v2529
    %v2531 = vmul.f32 %v2509, 1.442695
    %v2532 = vpow.pop %v2531
    %v2533 = vmul.f32 %v2510, 1.442695
    %v2534 = vpow.pop %v2533
    %v2535 = vmul.f32 %v2511, 1.442695
    %v2536 = vpow.pop %v2535
    %v2537 = vmul.f32 %v2512, 1.442695
    %v2538 = vpow.pop %v2537
    %v2539 = vmul.f32 %v2513, 1.442695
    %v2540 = vpow.pop %v2539
    %v2541 = vmul.f32 %v2514, 1.442695
    %v2542 = vpow.pop %v2541
    %v2543 = vmul.f32 %v2515, 1.442695
    %v2544 = vpow.pop %v2543
    %v2545 = vmul.f32 %v2516, 1.442695
    %v2546 = vpow.pop %v2545
    %v2547 = vmul.f32 %v2517, 1.442695
    %v2548 = vpow.pop %v2547
    %v2549 = vmul.f32 %v2518, 1.442695
    %v2550 = vpow.pop %v2549
    %v2551 = vadd.f32 %v2520, 1.0
    %v2552 = vadd.f32 %v2522, 1.0
    %v2553 = vadd.f32 %v2524, 1.0
    %v2554 = vadd.f32 %v2526, 1.0
    %v2555 = vadd.f32 %v2528, 1.0
    %v2556 = vadd.f32 %v2530, 1.0
    %v2557 = vadd.f32 %v2532, 1.0
    %v2558 = vadd.f32 %v2534, 1.0
    %v2559 = vadd.f32 %v2536, 1.0
    %v2560 = vadd.f32 %v2538, 1.0
    %v2561 = vadd.f32 %v2540, 1.0
    %v2562 = vadd.f32 %v2542, 1.0
    %v2563 = vadd.f32 %v2544, 1.0
    %v2564 = vadd.f32 %v2546, 1.0
    %v2565 = vadd.f32 %v2548, 1.0
    %v2566 = vadd.f32 %v2550, 1.0
    %v2567 = vrcp.pop %v2551
    %v2568 = vmul.f32 1.0, %v2567
    %v2569 = vrcp.pop %v2552
    %v2570 = vmul.f32 1.0, %v2569
    %v2571 = vrcp.pop %v2553
    %v2572 = vmul.f32 1.0, %v2571
    %v2573 = vrcp.pop %v2554
    %v2574 = vmul.f32 1.0, %v2573
    %v2575 = vrcp.pop %v2555
    %v2576 = vmul.f32 1.0, %v2575
    %v2577 = vrcp.pop %v2556
    %v2578 = vmul.f32 1.0, %v2577
    %v2579 = vrcp.pop %v2557
    %v2580 = vmul.f32 1.0, %v2579
    %v2581 = vrcp.pop %v2558
    %v2582 = vmul.f32 1.0, %v2581
    %v2583 = vrcp.pop %v2559
    %v2584 = vmul.f32 1.0, %v2583
    %v2585 = vrcp.pop %v2560
    %v2586 = vmul.f32 1.0, %v2585
    %v2587 = vrcp.pop %v2561
    %v2588 = vmul.f32 1.0, %v2587
    %v2589 = vrcp.pop %v2562
    %v2590 = vmul.f32 1.0, %v2589
    %v2591 = vrcp.pop %v2563
    %v2592 = vmul.f32 1.0, %v2591
    %v2593 = vrcp.pop %v2564
    %v2594 = vmul.f32 1.0, %v2593
    %v2595 = vrcp.pop %v2565
    %v2596 = vmul.f32 1.0, %v2595
    %v2597 = vrcp.pop %v2566
    %v2598 = vmul.f32 1.0, %v2597
    %2599 = vst [vmem:[#allocation13] sm:$0xff] %v2568
    %2600 = vst [vmem:[#allocation13 + $0x8] sm:$0xff] %v2570
    %2601 = vst [vmem:[#allocation13 + $0x10] sm:$0xff] %v2572
    %2602 = vst [vmem:[#allocation13 + $0x18] sm:$0xff] %v2574
    %2603 = vst [vmem:[#allocation13 + $0x20] sm:$0xff] %v2576
    %2604 = vst [vmem:[#allocation13 + $0x28] sm:$0xff] %v2578
    %2605 = vst [vmem:[#allocation13 + $0x30] sm:$0xff] %v2580
    %2606 = vst [vmem:[#allocation13 + $0x38] sm:$0xff] %v2582
    %2607 = vst [vmem:[#allocation13 + $0x40] sm:$0xff] %v2584
    %2608 = vst [vmem:[#allocation13 + $0x48] sm:$0xff] %v2586
    %2609 = vst [vmem:[#allocation13 + $0x50] sm:$0xff] %v2588
    %2610 = vst [vmem:[#allocation13 + $0x58] sm:$0xff] %v2590
    %2611 = vst [vmem:[#allocation13 + $0x60] sm:$0xff] %v2592
    %2612 = vst [vmem:[#allocation13 + $0x68] sm:$0xff] %v2594
    %2613 = vst [vmem:[#allocation13 + $0x70] sm:$0xff] %v2596
    %2614 = vst [vmem:[#allocation13 + $0x78] sm:$0xff] %v2598
    %2615 = vst [vmem:[#allocation14] sm:$0xff] %v1343
    %2616 = vst [vmem:[#allocation14 + $0x8] sm:$0xff] %v1345
    %2617 = vst [vmem:[#allocation14 + $0x10] sm:$0xff] %v1347
    %2618 = vst [vmem:[#allocation14 + $0x18] sm:$0xff] %v1349
    // Predicated region
    $region66: #{tpu_custom_call.1} parent=1 // pred_check
      _
    $region67: #{tpu_custom_call.1} parent=1 // pred_check_branch
      %2620 = sbr.rel (0) target = $region69
    $region68: #{tpu_custom_call.1} parent=1 // pred_region
      %s2622 = ssub.s32 2048, 2048
      %2623 = vsyncadd [#allocation4], %s2622
      %s2624 = sshll.u32 [#allocation13], 4
      %s2625 = int_to_ptr.vmem [resolvable:$true] %s2624
      %2630 = dma.vmem_to_hbm [thread:$0]  %s2625, 2048, %s10, [#allocation4], 1024, 1024, 64
    $region69: #{tpu_custom_call.1} parent=1 // pred_fallthru
      _
    // Predicated region
    $region70: #{tpu_custom_call.1} parent=1 // pred_check
      _
    $region71: #{tpu_custom_call.1} parent=1 // pred_check_branch
      %2632 = sbr.rel (0) target = $region73
    $region72: #{tpu_custom_call.1} parent=1 // pred_region
      %s2634 = ssub.s32 512, 512
      %2635 = vsyncadd [#allocation15], %s2634
      %s2636 = sshll.u32 [#allocation14], 4
      %s2637 = int_to_ptr.vmem [resolvable:$true] %s2636
      %2642 = dma.vmem_to_hbm [thread:$0]  %s2637, 512, %s11, [#allocation15], 256, 256, 16
    $region73: #{tpu_custom_call.1} parent=1 // pred_fallthru
      _
    // Predicated region
    $region74: #{tpu_custom_call.1} parent=1 // pred_check
      _
    $region75: #{tpu_custom_call.1} parent=1 // pred_check_branch
      %2644 = sbr.rel (0) target = $region77
    $region76: #{tpu_custom_call.1} parent=1 // pred_region
      %2645 = dma.done [#allocation4], 2048
    $region77: #{tpu_custom_call.1} parent=1 // pred_fallthru
      _
    // Predicated region
    $region78: #{tpu_custom_call.1} parent=1 // pred_check
      _
    $region79: #{tpu_custom_call.1} parent=1 // pred_check_branch
      %2647 = sbr.rel (0) target = $region81
    $region80: #{tpu_custom_call.1} parent=1 // pred_region
      %2648 = dma.done [#allocation15], 512
    $region81: #{tpu_custom_call.1} parent=1 // pred_fallthru
      _
    %2649 = vsyncpa [#allocation3], 1
    %2650 = vsyncpa [#allocation6], 1
    %2651 = vsyncpa [#allocation9], 1
    %2652 = vsyncpa [#allocation12], 1
    %2653 = vsyncpa [#allocation4], 1
    %2654 = vsyncpa [#allocation15], 1

</llo_original>
